<compile_context>
chip_gen: v7x
topology: tpu7x:2x2x1
jax: 0.10.0
libtpu: 0.0.40
codegen_flags: <defaults>
</compile_context>

<pallas_src>
import functools

import numpy as np
import jax
import jax.numpy as jnp
from jax import lax
from jax.experimental import pallas as pl
from jax.experimental.pallas import tpu as pltpu  # noqa: F401  (TPU backend import)


# ----------------------------- parameter slab packing -----------------------------

class _SlabBuilder:
    """Packs 2-D arrays into one lane-padded (rows, 128) slab with static row offsets."""

    def __init__(self, dtype, row_align):
        self.dtype = dtype
        self.row_align = row_align
        self.entries = {}          # name -> (row_offset, rows, cols)
        self._arrays = []
        self.rows = 0

    def add(self, name, arr):
        a = np.asarray(arr, np.float32)
        assert a.ndim == 2 and a.shape[1] <= 128, (name, a.shape)
        off = self.rows
        self.entries[name] = (off, a.shape[0], a.shape[1])
        self._arrays.append((off, a))
        nxt = off + a.shape[0]
        self.rows = ((nxt + self.row_align - 1) // self.row_align) * self.row_align

    def finalize(self):
        rows = max(self.rows, self.row_align)
        slab = np.zeros((rows, 128), np.float32)
        for off, a in self._arrays:
            slab[off:off + a.shape[0], :a.shape[1]] = a
        return jnp.asarray(slab, self.dtype), self.entries


def pack_params(params, cfg, batch_size):
    """Builds the bf16 weight slab + f32 constants slab and their static offset tables."""
    M, T = cfg["num_modes"], cfg["op_len"]
    D, H, L = cfg["noi_enc_size"], cfg["anchor_n_head"], cfg["anchor_layers"]
    B = batch_size
    dh = D // H
    assert D % H == 0

    wb = _SlabBuilder(jnp.bfloat16, 16)   # matmul weights (bf16, 16-row tile aligned)
    fb = _SlabBuilder(jnp.float32, 8)     # biases / LN / masks / offsets (f32, 8-row aligned)

    wb.add("anchors", params["anchors"])
    wb.add("anchor_emb_w", params["anchor_emb_w"])
    fb.add("anchor_emb_b", params["anchor_emb_b"])

    for li, lp in enumerate(params["dec_layers"]):
        p = f"l{li}"
        for blk, key in (("sa", "self_attn"), ("ca", "cross_attn")):
            bp = lp[key]
            wb.add(f"{p}_{blk}_wq", bp["wq"]); fb.add(f"{p}_{blk}_bq", bp["bq"])
            wb.add(f"{p}_{blk}_wk", bp["wk"]); fb.add(f"{p}_{blk}_bk", bp["bk"])
            wb.add(f"{p}_{blk}_wv", bp["wv"]); fb.add(f"{p}_{blk}_bv", bp["bv"])
            wb.add(f"{p}_{blk}_wo", bp["wo"]); fb.add(f"{p}_{blk}_bo", bp["bo"])
        for ln in ("ln1", "ln2", "ln3"):
            fb.add(f"{p}_{ln}_g", lp[ln + "_g"]); fb.add(f"{p}_{ln}_b", lp[ln + "_b"])
        wb.add(f"{p}_ffn_w1", lp["ffn_w1"]); fb.add(f"{p}_ffn_b1", lp["ffn_b1"])
        wb.add(f"{p}_ffn_w2", lp["ffn_w2"]); fb.add(f"{p}_ffn_b2", lp["ffn_b2"])

    wb.add("dec_out_w", params["dec_out_w"]); fb.add("dec_out_b", params["dec_out_b"])
    wb.add("op_traj_w1", params["op_traj_w1"]); fb.add("op_traj_b1", params["op_traj_b1"])
    wb.add("op_traj_w2", params["op_traj_w2"]); fb.add("op_traj_b2", params["op_traj_b2"])
    wb.add("op_prob_w1", params["op_prob_w1"]); fb.add("op_prob_b1", params["op_prob_b1"])
    wb.add("op_prob_w2", params["op_prob_w2"]); fb.add("op_prob_b2", params["op_prob_b2"])

    # --- param-derived constants (kept f32) ---
    anchors = np.asarray(params["anchors"], np.float32).reshape(M, T, 4)
    aoff = np.concatenate([anchors[..., :2], np.zeros((M, T, 3), np.float32)],
                          axis=-1).reshape(M, T * 5)
    fb.add("anchor_off", aoff)                                   # mu offsets on the (M, T*5) tile
    col = np.arange(T * 5) % 5
    fb.add("mu_mask", (col < 2).astype(np.float32)[None, :])     # [mu_x, mu_y, sig_x, sig_y, rho]
    fb.add("sig_mask", ((col >= 2) & (col < 4)).astype(np.float32)[None, :])

    lane = np.arange(D)
    for h in range(H):
        hm = ((lane // dh) == h).astype(np.float32)[None, :]
        fb.add(f"qmask{h}", hm * (dh ** -0.5))                   # head mask with 1/sqrt(dh) folded in
        fb.add(f"omask{h}", hm)

    qb = np.arange(B * M) // M                                   # batch id of each stacked row
    same = (qb[:, None] == qb[None, :])
    fb.add("neg_self", np.where(same, 0.0, -1e30).astype(np.float32))
    fb.add("group_mat", same.astype(np.float32))                 # per-batch selector for log-softmax

    wslab, W = wb.finalize()
    fslab, F = fb.finalize()
    return dict(wslab=wslab, fslab=fslab, W=W, F=F)


# --------------------------------- fused kernel ---------------------------------

def _decoder_kernel(wslab, fslab, agg_ref, negc_ref, out_ref, *, W, F, B, H, n_layers):
    f32, bf16 = jnp.float32, jnp.bfloat16

    def wld(name):                         # bf16 weight, loaded at point of use (static ref slice)
        off, r, c = W[name]
        return wslab[off:off + r, 0:c]

    def fld(name):                         # f32 bias / constant
        off, r, c = F[name]
        return fslab[off:off + r, 0:c]

    def mm(a, b):                          # bf16 MXU matmul, f32 accumulate
        return jnp.dot(a.astype(bf16), b, preferred_element_type=f32)

    def add_ln(x, y, gname, bname):        # post-LN residual (eps matches nn.LayerNorm default)
        z = x + y
        mu = jnp.mean(z, axis=-1, keepdims=True)
        zc = z - mu
        var = jnp.mean(zc * zc, axis=-1, keepdims=True)
        return zc * lax.rsqrt(var + 1e-5) * fld(gname) + fld(bname)

    def softmax_rows(s):
        s = s - jnp.max(s, axis=-1, keepdims=True)
        e = jnp.exp(s)
        return e * pl.reciprocal(jnp.sum(e, axis=-1, keepdims=True), approx=True)

    def attention(x, k16, v16, neg, pre):
        # Heads are separated with lane masks (no sub-vreg slicing of activations); the
        # per-head outputs are masked and summed so a single Wo matmul finishes the block.
        q = mm(x, wld(pre + "_wq")) + fld(pre + "_bq")                       # (rows, D) f32
        o = None
        for h in range(H):                                                    # static unroll
            qh = (q * fld(f"qmask{h}")).astype(bf16)                          # scale folded in
            s = lax.dot_general(qh, k16, (((1,), (1,)), ((), ())),            # no K transpose
                                preferred_element_type=f32)                   # (rows, keys)
            s = s + neg
            oh = mm(softmax_rows(s), v16) * fld(f"omask{h}")                  # (rows, D)
            o = oh if o is None else o + oh
        return mm(o, wld(pre + "_wo")) + fld(pre + "_bo")

    # ---- hoisted, layer-invariant values ----
    mem16 = agg_ref[...]                     # (B*N, D) bf16 memory tokens
    neg_cross = negc_ref[...]                # (B*M, B*N) additive block + key-padding mask
    neg_self = fld("neg_self")               # (B*M, B*M) block-diagonal batch mask

    # ---- anchor embedding (relu), tiled across the batch ----
    a_emb = jnp.maximum(mm(wld("anchors"), wld("anchor_emb_w")) + fld("anchor_emb_b"), 0.0)
    x = jnp.concatenate([a_emb] * B, axis=0)                                  # (B*M, D)

    # ---- transformer decoder layers: all batches in one set of matmuls ----
    for li in range(n_layers):
        p = f"l{li}"
        k_s = (mm(x, wld(p + "_sa_wk")) + fld(p + "_sa_bk")).astype(jnp.bfloat16)
        v_s = (mm(x, wld(p + "_sa_wv")) + fld(p + "_sa_bv")).astype(jnp.bfloat16)
        x = add_ln(x, attention(x, k_s, v_s, neg_self, p + "_sa"),
                   p + "_ln1_g", p + "_ln1_b")

        k_c = (mm(mem16, wld(p + "_ca_wk")) + fld(p + "_ca_bk")).astype(jnp.bfloat16)
        v_c = (mm(mem16, wld(p + "_ca_wv")) + fld(p + "_ca_bv")).astype(jnp.bfloat16)
        x = add_ln(x, attention(x, k_c, v_c, neg_cross, p + "_ca"),
                   p + "_ln2_g", p + "_ln2_b")

        hf = jnp.maximum(mm(x, wld(p + "_ffn_w1")) + fld(p + "_ffn_b1"), 0.0)
        ff = mm(hf, wld(p + "_ffn_w2")) + fld(p + "_ffn_b2")
        x = add_ln(x, ff, p + "_ln3_g", p + "_ln3_b")

    # ---- fused tail (batched over all B*M rows) ----
    me = mm(x, wld("dec_out_w")) + fld("dec_out_b")                           # (B*M, anchor_size)

    ht = jnp.maximum(mm(me, wld("op_traj_w1")) + fld("op_traj_b1"), 0.0)
    tr = mm(ht, wld("op_traj_w2")) + fld("op_traj_b2")                        # (B*M, T*5)
    aoff = jnp.concatenate([fld("anchor_off")] * B, axis=0)                   # (B*M, T*5)
    is_mu = fld("mu_mask") > 0.5
    is_sig = fld("sig_mask") > 0.5
    tr = jnp.where(is_mu, tr + aoff, jnp.where(is_sig, jnp.exp(tr), jnp.tanh(tr)))

    hp = jnp.maximum(mm(me, wld("op_prob_w1")) + fld("op_prob_b1"), 0.0)
    logits = mm(hp, wld("op_prob_w2")) + fld("op_prob_b2")                    # (B*M, 1)
    zc = logits - jnp.max(logits, axis=0, keepdims=True)                      # global shift is valid
    e = jnp.exp(zc)
    gsum = jnp.dot(fld("group_mat"), e, preferred_element_type=f32)           # per-batch sum per row
    lp = zc - jnp.log(gsum)                                                   # exact grouped log-softmax

    out_ref[...] = jnp.concatenate([tr, lp], axis=-1)                         # (B*M, T*5 + 1)


# ------------------------------- wrapper / forward ------------------------------

def decoder_forward(packed, inputs, cfg):
    agg_encoding = inputs["agg_encoding"]        # (B, N, noi_enc_size)
    noi_mask = inputs["noi_mask"]                # (B, N) bool, True = padded key
    B, N, D = agg_encoding.shape
    M, T = cfg["num_modes"], cfg["op_len"]
    assert D == cfg["noi_enc_size"]
    BM, BN = B * M, B * N

    # cross-attention additive mask: query row i (batch i//M) may attend key j (batch j//N)
    # iff same batch and the key is not padded.
    same = (np.arange(BM)[:, None] // M) == (np.arange(BN)[None, :] // N)
    valid = jnp.logical_and(jnp.asarray(same), jnp.logical_not(noi_mask.reshape(1, BN)))
    neg_cross = jnp.where(valid, 0.0, -1e30).astype(jnp.float32)

    agg = agg_encoding.reshape(BN, D).astype(jnp.bfloat16)

    kernel = functools.partial(
        _decoder_kernel, W=packed["W"], F=packed["F"],
        B=B, H=cfg["anchor_n_head"], n_layers=cfg["anchor_layers"])

    out = pl.pallas_call(
        kernel,
        out_shape=jax.ShapeDtypeStruct((BM, T * 5 + 1), jnp.float32),
    )(packed["wslab"], packed["fslab"], agg, neg_cross)

    traj = out[:, :T * 5].reshape(B, M, T, 5)
    log_probs = out[:, T * 5].reshape(B, M)
    probs = jnp.exp(log_probs)
    # TODO(synk): gmrc (eval-time greedy mode reduction when num_modes > k) not implemented;
    #             configuration uses k == num_modes so the training branch (probs = exp(lp)) applies.

    predictions = dict(inputs)
    predictions.update({"traj": traj, "probs": probs, "log_probs": log_probs})
    return predictions


# ---------------------------- parameter creation ---------------------------

def dense_params(key, fan_in, fan_out):
    kw, kb = jax.random.split(key)
    bound = 1.0 / (fan_in ** 0.5)
    w = jax.random.uniform(kw, (fan_in, fan_out), jnp.float32, -bound, bound)
    b = jax.random.uniform(kb, (1, fan_out), jnp.float32, -bound, bound)
    return w, b


def mha_params(key, d):
    ks = jax.random.split(key, 4)
    wq, bq = dense_params(ks[0], d, d)
    wk, bk = dense_params(ks[1], d, d)
    wv, bv = dense_params(ks[2], d, d)
    wo, bo = dense_params(ks[3], d, d)
    return dict(wq=wq, bq=bq, wk=wk, bk=bk, wv=wv, bv=bv, wo=wo, bo=bo)


def init_params(key, cfg):
    M, T = cfg["num_modes"], cfg["op_len"]
    D, A = cfg["noi_enc_size"], cfg["anchor_size"]
    Hdn, F = cfg["hidden_size"], cfg["ffn_size"]
    keys = jax.random.split(key, 16)
    p = {}
    # nn.Parameter(zeros) by default; generate_anchors() would fill it. Use deterministic
    # pseudo-GMM anchors so the forward pass is non-degenerate.
    p["anchors"] = 0.5 * jax.random.normal(keys[0], (M, T * 4), jnp.float32)
    p["anchor_emb_w"], p["anchor_emb_b"] = dense_params(keys[1], T * 4, D)
    layers = []
    for li in range(cfg["anchor_layers"]):
        lk = jax.random.split(keys[2 + li], 4)
        lp = {"self_attn": mha_params(lk[0], D), "cross_attn": mha_params(lk[1], D)}
        for ln in ("ln1", "ln2", "ln3"):
            lp[ln + "_g"] = jnp.ones((1, D), jnp.float32)
            lp[ln + "_b"] = jnp.zeros((1, D), jnp.float32)
        lp["ffn_w1"], lp["ffn_b1"] = dense_params(lk[2], D, F)
        lp["ffn_w2"], lp["ffn_b2"] = dense_params(lk[3], F, D)
        layers.append(lp)
    p["dec_layers"] = layers
    p["dec_out_w"], p["dec_out_b"] = dense_params(keys[10], D, A)
    p["op_traj_w1"], p["op_traj_b1"] = dense_params(keys[11], A, Hdn)
    p["op_traj_w2"], p["op_traj_b2"] = dense_params(keys[12], Hdn, T * 5)
    p["op_prob_w1"], p["op_prob_b1"] = dense_params(keys[13], A, Hdn)
    p["op_prob_w2"], p["op_prob_b2"] = dense_params(keys[14], Hdn, 1)
    return p


# ----------------------------------- main -----------------------------------

if __name__ == "__main__":
    cfg = dict(num_modes=8, k=8, op_len=6, n_sample=10,
               anchor_size=32, hidden_size=32, noi_enc_size=32,
               anchor_n_head=2, anchor_layers=1, ffn_size=64)
    B, N = 2, 8

    key = jax.random.PRNGKey(0)
    k_par, k_enc, k_mask = jax.random.split(key, 3)

    params = init_params(k_par, cfg)
    packed = pack_params(params, cfg, batch_size=B)          # one-time slab packing

    agg_encoding = jax.random.normal(k_enc, (B, N, cfg["noi_enc_size"]), jnp.float32)
    noi_mask = jax.random.bernoulli(k_mask, 0.25, (B, N))    # True = padded memory token
    noi_mask = noi_mask.at[:, 0].set(False)                  # keep at least one valid token

    inputs = {"agg_encoding": agg_encoding, "noi_mask": noi_mask}
    out = decoder_forward(packed, inputs, cfg)

    jax.block_until_ready(out["traj"])
    jax.block_until_ready(out["probs"])
    jax.block_until_ready(out["log_probs"])

    assert out["traj"].shape == (B, cfg["num_modes"], cfg["op_len"], 5)
    assert out["probs"].shape == (B, cfg["num_modes"])
    assert out["log_probs"].shape == (B, cfg["num_modes"])
    assert bool(jnp.all(jnp.isfinite(out["traj"])))
    assert bool(jnp.all(jnp.isfinite(out["log_probs"])))
    assert bool(jnp.allclose(jnp.sum(out["probs"], axis=1), 1.0, atol=1e-4))

    print("KERNEL_OK")
</pallas_src>

<mosaic_0001>
module attributes {stable_mosaic.version = 11 : i64} {
  func.func @_decoder_kernel(%arg0: memref<560x128xbf16, #tpu.memory_space<vmem>>, %arg1: memref<264x128xf32, #tpu.memory_space<vmem>>, %arg2: memref<16x32xbf16, #tpu.memory_space<vmem>>, %arg3: memref<16x16xf32, #tpu.memory_space<vmem>>, %arg4: memref<16x31xf32, #tpu.memory_space<vmem>>) attributes {dimension_semantics = [], scalar_prefetch = 0 : i64, scratch_operands = 0 : i64, tpu.core_type = #tpu.core_type<tc>} {
    %c0 = arith.constant 0 : index
    %c0_0 = arith.constant 0 : index
    %0 = vector.load %arg2[%c0, %c0_0] : memref<16x32xbf16, #tpu.memory_space<vmem>>, vector<16x32xbf16>
    %c0_1 = arith.constant 0 : index
    %c0_2 = arith.constant 0 : index
    %1 = vector.load %arg3[%c0_1, %c0_2] : memref<16x16xf32, #tpu.memory_space<vmem>>, vector<16x16xf32>
    %c232 = arith.constant 232 : index
    %c0_3 = arith.constant 0 : index
    %2 = vector.load %arg1[%c232, %c0_3] : memref<264x128xf32, #tpu.memory_space<vmem>>, vector<16x16xf32>
    %c0_4 = arith.constant 0 : index
    %c0_5 = arith.constant 0 : index
    %3 = vector.load %arg0[%c0_4, %c0_5] : memref<560x128xbf16, #tpu.memory_space<vmem>>, vector<8x24xbf16>
    %c16 = arith.constant 16 : index
    %c0_6 = arith.constant 0 : index
    %4 = vector.load %arg0[%c16, %c0_6] : memref<560x128xbf16, #tpu.memory_space<vmem>>, vector<24x32xbf16>
    %cst = arith.constant dense<0.000000e+00> : vector<8x32xf32>
    %5 = tpu.matmul %3, %4, %cst {dimension_numbers = #tpu.dot_dimension_numbers<[1], [0], [0], [1], [0, 0, 1, 1], [], []>} : vector<8x24xbf16>, vector<24x32xbf16>, vector<8x32xf32> -> vector<8x32xf32>
    %c0_7 = arith.constant 0 : index
    %c0_8 = arith.constant 0 : index
    %6 = vector.load %arg1[%c0_7, %c0_8] : memref<264x128xf32, #tpu.memory_space<vmem>>, vector<1x32xf32>
    %7 = vector.broadcast %6 : vector<1x32xf32> to vector<8x32xf32>
    %8 = arith.addf %5, %7 : vector<8x32xf32>
    %cst_9 = arith.constant 0.000000e+00 : f32
    %9 = vector.broadcast %cst_9 : f32 to vector<8x32xf32>
    %10 = arith.maximumf %8, %9 : vector<8x32xf32>
    %11 = tpu.concatenate %10, %10 in 0 : vector<8x32xf32>, vector<8x32xf32> -> vector<16x32xf32>
    %c80 = arith.constant 80 : index
    %c0_10 = arith.constant 0 : index
    %12 = vector.load %arg0[%c80, %c0_10] : memref<560x128xbf16, #tpu.memory_space<vmem>>, vector<32x32xbf16>
    %13 = arith.truncf %11 : vector<16x32xf32> to vector<16x32xbf16>
    %cst_11 = arith.constant dense<0.000000e+00> : vector<16x32xf32>
    %14 = tpu.matmul %13, %12, %cst_11 {dimension_numbers = #tpu.dot_dimension_numbers<[1], [0], [0], [1], [0, 0, 1, 1], [], []>} : vector<16x32xbf16>, vector<32x32xbf16>, vector<16x32xf32> -> vector<16x32xf32>
    %c16_12 = arith.constant 16 : index
    %c0_13 = arith.constant 0 : index
    %15 = vector.load %arg1[%c16_12, %c0_13] : memref<264x128xf32, #tpu.memory_space<vmem>>, vector<1x32xf32>
    %16 = vector.broadcast %15 : vector<1x32xf32> to vector<16x32xf32>
    %17 = arith.addf %14, %16 : vector<16x32xf32>
    %18 = arith.truncf %17 : vector<16x32xf32> to vector<16x32xbf16>
    %c112 = arith.constant 112 : index
    %c0_14 = arith.constant 0 : index
    %19 = vector.load %arg0[%c112, %c0_14] : memref<560x128xbf16, #tpu.memory_space<vmem>>, vector<32x32xbf16>
    %20 = arith.truncf %11 : vector<16x32xf32> to vector<16x32xbf16>
    %cst_15 = arith.constant dense<0.000000e+00> : vector<16x32xf32>
    %21 = tpu.matmul %20, %19, %cst_15 {dimension_numbers = #tpu.dot_dimension_numbers<[1], [0], [0], [1], [0, 0, 1, 1], [], []>} : vector<16x32xbf16>, vector<32x32xbf16>, vector<16x32xf32> -> vector<16x32xf32>
    %c24 = arith.constant 24 : index
    %c0_16 = arith.constant 0 : index
    %22 = vector.load %arg1[%c24, %c0_16] : memref<264x128xf32, #tpu.memory_space<vmem>>, vector<1x32xf32>
    %23 = vector.broadcast %22 : vector<1x32xf32> to vector<16x32xf32>
    %24 = arith.addf %21, %23 : vector<16x32xf32>
    %25 = arith.truncf %24 : vector<16x32xf32> to vector<16x32xbf16>
    %c48 = arith.constant 48 : index
    %c0_17 = arith.constant 0 : index
    %26 = vector.load %arg0[%c48, %c0_17] : memref<560x128xbf16, #tpu.memory_space<vmem>>, vector<32x32xbf16>
    %27 = arith.truncf %11 : vector<16x32xf32> to vector<16x32xbf16>
    %cst_18 = arith.constant dense<0.000000e+00> : vector<16x32xf32>
    %28 = tpu.matmul %27, %26, %cst_18 {dimension_numbers = #tpu.dot_dimension_numbers<[1], [0], [0], [1], [0, 0, 1, 1], [], []>} : vector<16x32xbf16>, vector<32x32xbf16>, vector<16x32xf32> -> vector<16x32xf32>
    %c8 = arith.constant 8 : index
    %c0_19 = arith.constant 0 : index
    %29 = vector.load %arg1[%c8, %c0_19] : memref<264x128xf32, #tpu.memory_space<vmem>>, vector<1x32xf32>
    %30 = vector.broadcast %29 : vector<1x32xf32> to vector<16x32xf32>
    %31 = arith.addf %28, %30 : vector<16x32xf32>
    %c200 = arith.constant 200 : index
    %c0_20 = arith.constant 0 : index
    %32 = vector.load %arg1[%c200, %c0_20] : memref<264x128xf32, #tpu.memory_space<vmem>>, vector<1x32xf32>
    %33 = vector.broadcast %32 : vector<1x32xf32> to vector<16x32xf32>
    %34 = arith.mulf %31, %33 : vector<16x32xf32>
    %35 = arith.truncf %34 : vector<16x32xf32> to vector<16x32xbf16>
    %cst_21 = arith.constant dense<0.000000e+00> : vector<16x16xf32>
    %36 = tpu.matmul %35, %18, %cst_21 {dimension_numbers = #tpu.dot_dimension_numbers<[1], [1], [0], [0], [0, 0, 1, 0], [], []>} : vector<16x32xbf16>, vector<16x32xbf16>, vector<16x16xf32> -> vector<16x16xf32>
    %37 = arith.addf %36, %2 : vector<16x16xf32>
    %cst_22 = arith.constant dense<0xFF800000> : vector<16xf32>
    %38 = vector.multi_reduction <maximumf>, %37, %cst_22 [1] : vector<16x16xf32> to vector<16xf32>
    %39 = vector.shape_cast %38 : vector<16xf32> to vector<16x1xf32>
    %40 = vector.broadcast %39 : vector<16x1xf32> to vector<16x16xf32>
    %41 = arith.subf %37, %40 : vector<16x16xf32>
    %42 = math.exp %41 : vector<16x16xf32>
    %cst_23 = arith.constant dense<0.000000e+00> : vector<16xf32>
    %43 = vector.multi_reduction <add>, %42, %cst_23 [1] : vector<16x16xf32> to vector<16xf32>
    %44 = vector.shape_cast %43 : vector<16xf32> to vector<16x1xf32>
    %45 = tpu.reciprocal %44 {approx = true} : vector<16x1xf32> -> vector<16x1xf32>
    %46 = vector.broadcast %45 : vector<16x1xf32> to vector<16x16xf32>
    %47 = arith.mulf %42, %46 : vector<16x16xf32>
    %48 = arith.truncf %47 : vector<16x16xf32> to vector<16x16xbf16>
    %cst_24 = arith.constant dense<0.000000e+00> : vector<16x32xf32>
    %49 = tpu.matmul %48, %25, %cst_24 {dimension_numbers = #tpu.dot_dimension_numbers<[1], [0], [0], [1], [0, 0, 1, 1], [], []>} : vector<16x16xbf16>, vector<16x32xbf16>, vector<16x32xf32> -> vector<16x32xf32>
    %c208 = arith.constant 208 : index
    %c0_25 = arith.constant 0 : index
    %50 = vector.load %arg1[%c208, %c0_25] : memref<264x128xf32, #tpu.memory_space<vmem>>, vector<1x32xf32>
    %51 = vector.broadcast %50 : vector<1x32xf32> to vector<16x32xf32>
    %52 = arith.mulf %49, %51 : vector<16x32xf32>
    %c216 = arith.constant 216 : index
    %c0_26 = arith.constant 0 : index
    %53 = vector.load %arg1[%c216, %c0_26] : memref<264x128xf32, #tpu.memory_space<vmem>>, vector<1x32xf32>
    %54 = vector.broadcast %53 : vector<1x32xf32> to vector<16x32xf32>
    %55 = arith.mulf %31, %54 : vector<16x32xf32>
    %56 = arith.truncf %55 : vector<16x32xf32> to vector<16x32xbf16>
    %cst_27 = arith.constant dense<0.000000e+00> : vector<16x16xf32>
    %57 = tpu.matmul %56, %18, %cst_27 {dimension_numbers = #tpu.dot_dimension_numbers<[1], [1], [0], [0], [0, 0, 1, 0], [], []>} : vector<16x32xbf16>, vector<16x32xbf16>, vector<16x16xf32> -> vector<16x16xf32>
    %58 = arith.addf %57, %2 : vector<16x16xf32>
    %cst_28 = arith.constant dense<0xFF800000> : vector<16xf32>
    %59 = vector.multi_reduction <maximumf>, %58, %cst_28 [1] : vector<16x16xf32> to vector<16xf32>
    %60 = vector.shape_cast %59 : vector<16xf32> to vector<16x1xf32>
    %61 = vector.broadcast %60 : vector<16x1xf32> to vector<16x16xf32>
    %62 = arith.subf %58, %61 : vector<16x16xf32>
    %63 = math.exp %62 : vector<16x16xf32>
    %cst_29 = arith.constant dense<0.000000e+00> : vector<16xf32>
    %64 = vector.multi_reduction <add>, %63, %cst_29 [1] : vector<16x16xf32> to vector<16xf32>
    %65 = vector.shape_cast %64 : vector<16xf32> to vector<16x1xf32>
    %66 = tpu.reciprocal %65 {approx = true} : vector<16x1xf32> -> vector<16x1xf32>
    %67 = vector.broadcast %66 : vector<16x1xf32> to vector<16x16xf32>
    %68 = arith.mulf %63, %67 : vector<16x16xf32>
    %69 = arith.truncf %68 : vector<16x16xf32> to vector<16x16xbf16>
    %cst_30 = arith.constant dense<0.000000e+00> : vector<16x32xf32>
    %70 = tpu.matmul %69, %25, %cst_30 {dimension_numbers = #tpu.dot_dimension_numbers<[1], [0], [0], [1], [0, 0, 1, 1], [], []>} : vector<16x16xbf16>, vector<16x32xbf16>, vector<16x32xf32> -> vector<16x32xf32>
    %c224 = arith.constant 224 : index
    %c0_31 = arith.constant 0 : index
    %71 = vector.load %arg1[%c224, %c0_31] : memref<264x128xf32, #tpu.memory_space<vmem>>, vector<1x32xf32>
    %72 = vector.broadcast %71 : vector<1x32xf32> to vector<16x32xf32>
    %73 = arith.mulf %70, %72 : vector<16x32xf32>
    %74 = arith.addf %52, %73 : vector<16x32xf32>
    %c144 = arith.constant 144 : index
    %c0_32 = arith.constant 0 : index
    %75 = vector.load %arg0[%c144, %c0_32] : memref<560x128xbf16, #tpu.memory_space<vmem>>, vector<32x32xbf16>
    %76 = arith.truncf %74 : vector<16x32xf32> to vector<16x32xbf16>
    %cst_33 = arith.constant dense<0.000000e+00> : vector<16x32xf32>
    %77 = tpu.matmul %76, %75, %cst_33 {dimension_numbers = #tpu.dot_dimension_numbers<[1], [0], [0], [1], [0, 0, 1, 1], [], []>} : vector<16x32xbf16>, vector<32x32xbf16>, vector<16x32xf32> -> vector<16x32xf32>
    %c32 = arith.constant 32 : index
    %c0_34 = arith.constant 0 : index
    %78 = vector.load %arg1[%c32, %c0_34] : memref<264x128xf32, #tpu.memory_space<vmem>>, vector<1x32xf32>
    %79 = vector.broadcast %78 : vector<1x32xf32> to vector<16x32xf32>
    %80 = arith.addf %77, %79 : vector<16x32xf32>
    %81 = arith.addf %11, %80 : vector<16x32xf32>
    %cst_35 = arith.constant dense<0.000000e+00> : vector<16xf32>
    %82 = vector.multi_reduction <add>, %81, %cst_35 [1] : vector<16x32xf32> to vector<16xf32>
    %83 = vector.shape_cast %82 : vector<16xf32> to vector<16x1xf32>
    %cst_36 = arith.constant 3.200000e+01 : f32
    %84 = vector.broadcast %cst_36 : f32 to vector<16x1xf32>
    %85 = arith.divf %83, %84 : vector<16x1xf32>
    %86 = vector.broadcast %85 : vector<16x1xf32> to vector<16x32xf32>
    %87 = arith.subf %81, %86 : vector<16x32xf32>
    %88 = arith.mulf %87, %87 : vector<16x32xf32>
    %cst_37 = arith.constant dense<0.000000e+00> : vector<16xf32>
    %89 = vector.multi_reduction <add>, %88, %cst_37 [1] : vector<16x32xf32> to vector<16xf32>
    %90 = vector.shape_cast %89 : vector<16xf32> to vector<16x1xf32>
    %cst_38 = arith.constant 3.200000e+01 : f32
    %91 = vector.broadcast %cst_38 : f32 to vector<16x1xf32>
    %92 = arith.divf %90, %91 : vector<16x1xf32>
    %cst_39 = arith.constant 9.99999974E-6 : f32
    %93 = vector.broadcast %cst_39 : f32 to vector<16x1xf32>
    %94 = arith.addf %92, %93 : vector<16x1xf32>
    %95 = math.rsqrt %94 : vector<16x1xf32>
    %96 = vector.broadcast %95 : vector<16x1xf32> to vector<16x32xf32>
    %97 = arith.mulf %87, %96 : vector<16x32xf32>
    %c72 = arith.constant 72 : index
    %c0_40 = arith.constant 0 : index
    %98 = vector.load %arg1[%c72, %c0_40] : memref<264x128xf32, #tpu.memory_space<vmem>>, vector<1x32xf32>
    %99 = vector.broadcast %98 : vector<1x32xf32> to vector<16x32xf32>
    %100 = arith.mulf %97, %99 : vector<16x32xf32>
    %c80_41 = arith.constant 80 : index
    %c0_42 = arith.constant 0 : index
    %101 = vector.load %arg1[%c80_41, %c0_42] : memref<264x128xf32, #tpu.memory_space<vmem>>, vector<1x32xf32>
    %102 = vector.broadcast %101 : vector<1x32xf32> to vector<16x32xf32>
    %103 = arith.addf %100, %102 : vector<16x32xf32>
    %c208_43 = arith.constant 208 : index
    %c0_44 = arith.constant 0 : index
    %104 = vector.load %arg0[%c208_43, %c0_44] : memref<560x128xbf16, #tpu.memory_space<vmem>>, vector<32x32xbf16>
    %cst_45 = arith.constant dense<0.000000e+00> : vector<16x32xf32>
    %105 = tpu.matmul %0, %104, %cst_45 {dimension_numbers = #tpu.dot_dimension_numbers<[1], [0], [0], [1], [0, 0, 1, 1], [], []>} : vector<16x32xbf16>, vector<32x32xbf16>, vector<16x32xf32> -> vector<16x32xf32>
    %c48_46 = arith.constant 48 : index
    %c0_47 = arith.constant 0 : index
    %106 = vector.load %arg1[%c48_46, %c0_47] : memref<264x128xf32, #tpu.memory_space<vmem>>, vector<1x32xf32>
    %107 = vector.broadcast %106 : vector<1x32xf32> to vector<16x32xf32>
    %108 = arith.addf %105, %107 : vector<16x32xf32>
    %109 = arith.truncf %108 : vector<16x32xf32> to vector<16x32xbf16>
    %c240 = arith.constant 240 : index
    %c0_48 = arith.constant 0 : index
    %110 = vector.load %arg0[%c240, %c0_48] : memref<560x128xbf16, #tpu.memory_space<vmem>>, vector<32x32xbf16>
    %cst_49 = arith.constant dense<0.000000e+00> : vector<16x32xf32>
    %111 = tpu.matmul %0, %110, %cst_49 {dimension_numbers = #tpu.dot_dimension_numbers<[1], [0], [0], [1], [0, 0, 1, 1], [], []>} : vector<16x32xbf16>, vector<32x32xbf16>, vector<16x32xf32> -> vector<16x32xf32>
    %c56 = arith.constant 56 : index
    %c0_50 = arith.constant 0 : index
    %112 = vector.load %arg1[%c56, %c0_50] : memref<264x128xf32, #tpu.memory_space<vmem>>, vector<1x32xf32>
    %113 = vector.broadcast %112 : vector<1x32xf32> to vector<16x32xf32>
    %114 = arith.addf %111, %113 : vector<16x32xf32>
    %115 = arith.truncf %114 : vector<16x32xf32> to vector<16x32xbf16>
    %c176 = arith.constant 176 : index
    %c0_51 = arith.constant 0 : index
    %116 = vector.load %arg0[%c176, %c0_51] : memref<560x128xbf16, #tpu.memory_space<vmem>>, vector<32x32xbf16>
    %117 = arith.truncf %103 : vector<16x32xf32> to vector<16x32xbf16>
    %cst_52 = arith.constant dense<0.000000e+00> : vector<16x32xf32>
    %118 = tpu.matmul %117, %116, %cst_52 {dimension_numbers = #tpu.dot_dimension_numbers<[1], [0], [0], [1], [0, 0, 1, 1], [], []>} : vector<16x32xbf16>, vector<32x32xbf16>, vector<16x32xf32> -> vector<16x32xf32>
    %c40 = arith.constant 40 : index
    %c0_53 = arith.constant 0 : index
    %119 = vector.load %arg1[%c40, %c0_53] : memref<264x128xf32, #tpu.memory_space<vmem>>, vector<1x32xf32>
    %120 = vector.broadcast %119 : vector<1x32xf32> to vector<16x32xf32>
    %121 = arith.addf %118, %120 : vector<16x32xf32>
    %c200_54 = arith.constant 200 : index
    %c0_55 = arith.constant 0 : index
    %122 = vector.load %arg1[%c200_54, %c0_55] : memref<264x128xf32, #tpu.memory_space<vmem>>, vector<1x32xf32>
    %123 = vector.broadcast %122 : vector<1x32xf32> to vector<16x32xf32>
    %124 = arith.mulf %121, %123 : vector<16x32xf32>
    %125 = arith.truncf %124 : vector<16x32xf32> to vector<16x32xbf16>
    %cst_56 = arith.constant dense<0.000000e+00> : vector<16x16xf32>
    %126 = tpu.matmul %125, %109, %cst_56 {dimension_numbers = #tpu.dot_dimension_numbers<[1], [1], [0], [0], [0, 0, 1, 0], [], []>} : vector<16x32xbf16>, vector<16x32xbf16>, vector<16x16xf32> -> vector<16x16xf32>
    %127 = arith.addf %126, %1 : vector<16x16xf32>
    %cst_57 = arith.constant dense<0xFF800000> : vector<16xf32>
    %128 = vector.multi_reduction <maximumf>, %127, %cst_57 [1] : vector<16x16xf32> to vector<16xf32>
    %129 = vector.shape_cast %128 : vector<16xf32> to vector<16x1xf32>
    %130 = vector.broadcast %129 : vector<16x1xf32> to vector<16x16xf32>
    %131 = arith.subf %127, %130 : vector<16x16xf32>
    %132 = math.exp %131 : vector<16x16xf32>
    %cst_58 = arith.constant dense<0.000000e+00> : vector<16xf32>
    %133 = vector.multi_reduction <add>, %132, %cst_58 [1] : vector<16x16xf32> to vector<16xf32>
    %134 = vector.shape_cast %133 : vector<16xf32> to vector<16x1xf32>
    %135 = tpu.reciprocal %134 {approx = true} : vector<16x1xf32> -> vector<16x1xf32>
    %136 = vector.broadcast %135 : vector<16x1xf32> to vector<16x16xf32>
    %137 = arith.mulf %132, %136 : vector<16x16xf32>
    %138 = arith.truncf %137 : vector<16x16xf32> to vector<16x16xbf16>
    %cst_59 = arith.constant dense<0.000000e+00> : vector<16x32xf32>
    %139 = tpu.matmul %138, %115, %cst_59 {dimension_numbers = #tpu.dot_dimension_numbers<[1], [0], [0], [1], [0, 0, 1, 1], [], []>} : vector<16x16xbf16>, vector<16x32xbf16>, vector<16x32xf32> -> vector<16x32xf32>
    %c208_60 = arith.constant 208 : index
    %c0_61 = arith.constant 0 : index
    %140 = vector.load %arg1[%c208_60, %c0_61] : memref<264x128xf32, #tpu.memory_space<vmem>>, vector<1x32xf32>
    %141 = vector.broadcast %140 : vector<1x32xf32> to vector<16x32xf32>
    %142 = arith.mulf %139, %141 : vector<16x32xf32>
    %c216_62 = arith.constant 216 : index
    %c0_63 = arith.constant 0 : index
    %143 = vector.load %arg1[%c216_62, %c0_63] : memref<264x128xf32, #tpu.memory_space<vmem>>, vector<1x32xf32>
    %144 = vector.broadcast %143 : vector<1x32xf32> to vector<16x32xf32>
    %145 = arith.mulf %121, %144 : vector<16x32xf32>
    %146 = arith.truncf %145 : vector<16x32xf32> to vector<16x32xbf16>
    %cst_64 = arith.constant dense<0.000000e+00> : vector<16x16xf32>
    %147 = tpu.matmul %146, %109, %cst_64 {dimension_numbers = #tpu.dot_dimension_numbers<[1], [1], [0], [0], [0, 0, 1, 0], [], []>} : vector<16x32xbf16>, vector<16x32xbf16>, vector<16x16xf32> -> vector<16x16xf32>
    %148 = arith.addf %147, %1 : vector<16x16xf32>
    %cst_65 = arith.constant dense<0xFF800000> : vector<16xf32>
    %149 = vector.multi_reduction <maximumf>, %148, %cst_65 [1] : vector<16x16xf32> to vector<16xf32>
    %150 = vector.shape_cast %149 : vector<16xf32> to vector<16x1xf32>
    %151 = vector.broadcast %150 : vector<16x1xf32> to vector<16x16xf32>
    %152 = arith.subf %148, %151 : vector<16x16xf32>
    %153 = math.exp %152 : vector<16x16xf32>
    %cst_66 = arith.constant dense<0.000000e+00> : vector<16xf32>
    %154 = vector.multi_reduction <add>, %153, %cst_66 [1] : vector<16x16xf32> to vector<16xf32>
    %155 = vector.shape_cast %154 : vector<16xf32> to vector<16x1xf32>
    %156 = tpu.reciprocal %155 {approx = true} : vector<16x1xf32> -> vector<16x1xf32>
    %157 = vector.broadcast %156 : vector<16x1xf32> to vector<16x16xf32>
    %158 = arith.mulf %153, %157 : vector<16x16xf32>
    %159 = arith.truncf %158 : vector<16x16xf32> to vector<16x16xbf16>
    %cst_67 = arith.constant dense<0.000000e+00> : vector<16x32xf32>
    %160 = tpu.matmul %159, %115, %cst_67 {dimension_numbers = #tpu.dot_dimension_numbers<[1], [0], [0], [1], [0, 0, 1, 1], [], []>} : vector<16x16xbf16>, vector<16x32xbf16>, vector<16x32xf32> -> vector<16x32xf32>
    %c224_68 = arith.constant 224 : index
    %c0_69 = arith.constant 0 : index
    %161 = vector.load %arg1[%c224_68, %c0_69] : memref<264x128xf32, #tpu.memory_space<vmem>>, vector<1x32xf32>
    %162 = vector.broadcast %161 : vector<1x32xf32> to vector<16x32xf32>
    %163 = arith.mulf %160, %162 : vector<16x32xf32>
    %164 = arith.addf %142, %163 : vector<16x32xf32>
    %c272 = arith.constant 272 : index
    %c0_70 = arith.constant 0 : index
    %165 = vector.load %arg0[%c272, %c0_70] : memref<560x128xbf16, #tpu.memory_space<vmem>>, vector<32x32xbf16>
    %166 = arith.truncf %164 : vector<16x32xf32> to vector<16x32xbf16>
    %cst_71 = arith.constant dense<0.000000e+00> : vector<16x32xf32>
    %167 = tpu.matmul %166, %165, %cst_71 {dimension_numbers = #tpu.dot_dimension_numbers<[1], [0], [0], [1], [0, 0, 1, 1], [], []>} : vector<16x32xbf16>, vector<32x32xbf16>, vector<16x32xf32> -> vector<16x32xf32>
    %c64 = arith.constant 64 : index
    %c0_72 = arith.constant 0 : index
    %168 = vector.load %arg1[%c64, %c0_72] : memref<264x128xf32, #tpu.memory_space<vmem>>, vector<1x32xf32>
    %169 = vector.broadcast %168 : vector<1x32xf32> to vector<16x32xf32>
    %170 = arith.addf %167, %169 : vector<16x32xf32>
    %171 = arith.addf %103, %170 : vector<16x32xf32>
    %cst_73 = arith.constant dense<0.000000e+00> : vector<16xf32>
    %172 = vector.multi_reduction <add>, %171, %cst_73 [1] : vector<16x32xf32> to vector<16xf32>
    %173 = vector.shape_cast %172 : vector<16xf32> to vector<16x1xf32>
    %cst_74 = arith.constant 3.200000e+01 : f32
    %174 = vector.broadcast %cst_74 : f32 to vector<16x1xf32>
    %175 = arith.divf %173, %174 : vector<16x1xf32>
    %176 = vector.broadcast %175 : vector<16x1xf32> to vector<16x32xf32>
    %177 = arith.subf %171, %176 : vector<16x32xf32>
    %178 = arith.mulf %177, %177 : vector<16x32xf32>
    %cst_75 = arith.constant dense<0.000000e+00> : vector<16xf32>
    %179 = vector.multi_reduction <add>, %178, %cst_75 [1] : vector<16x32xf32> to vector<16xf32>
    %180 = vector.shape_cast %179 : vector<16xf32> to vector<16x1xf32>
    %cst_76 = arith.constant 3.200000e+01 : f32
    %181 = vector.broadcast %cst_76 : f32 to vector<16x1xf32>
    %182 = arith.divf %180, %181 : vector<16x1xf32>
    %cst_77 = arith.constant 9.99999974E-6 : f32
    %183 = vector.broadcast %cst_77 : f32 to vector<16x1xf32>
    %184 = arith.addf %182, %183 : vector<16x1xf32>
    %185 = math.rsqrt %184 : vector<16x1xf32>
    %186 = vector.broadcast %185 : vector<16x1xf32> to vector<16x32xf32>
    %187 = arith.mulf %177, %186 : vector<16x32xf32>
    %c88 = arith.constant 88 : index
    %c0_78 = arith.constant 0 : index
    %188 = vector.load %arg1[%c88, %c0_78] : memref<264x128xf32, #tpu.memory_space<vmem>>, vector<1x32xf32>
    %189 = vector.broadcast %188 : vector<1x32xf32> to vector<16x32xf32>
    %190 = arith.mulf %187, %189 : vector<16x32xf32>
    %c96 = arith.constant 96 : index
    %c0_79 = arith.constant 0 : index
    %191 = vector.load %arg1[%c96, %c0_79] : memref<264x128xf32, #tpu.memory_space<vmem>>, vector<1x32xf32>
    %192 = vector.broadcast %191 : vector<1x32xf32> to vector<16x32xf32>
    %193 = arith.addf %190, %192 : vector<16x32xf32>
    %c304 = arith.constant 304 : index
    %c0_80 = arith.constant 0 : index
    %194 = vector.load %arg0[%c304, %c0_80] : memref<560x128xbf16, #tpu.memory_space<vmem>>, vector<32x64xbf16>
    %195 = arith.truncf %193 : vector<16x32xf32> to vector<16x32xbf16>
    %cst_81 = arith.constant dense<0.000000e+00> : vector<16x64xf32>
    %196 = tpu.matmul %195, %194, %cst_81 {dimension_numbers = #tpu.dot_dimension_numbers<[1], [0], [0], [1], [0, 0, 1, 1], [], []>} : vector<16x32xbf16>, vector<32x64xbf16>, vector<16x64xf32> -> vector<16x64xf32>
    %c120 = arith.constant 120 : index
    %c0_82 = arith.constant 0 : index
    %197 = vector.load %arg1[%c120, %c0_82] : memref<264x128xf32, #tpu.memory_space<vmem>>, vector<1x64xf32>
    %198 = vector.broadcast %197 : vector<1x64xf32> to vector<16x64xf32>
    %199 = arith.addf %196, %198 : vector<16x64xf32>
    %cst_83 = arith.constant 0.000000e+00 : f32
    %200 = vector.broadcast %cst_83 : f32 to vector<16x64xf32>
    %201 = arith.maximumf %199, %200 : vector<16x64xf32>
    %c336 = arith.constant 336 : index
    %c0_84 = arith.constant 0 : index
    %202 = vector.load %arg0[%c336, %c0_84] : memref<560x128xbf16, #tpu.memory_space<vmem>>, vector<64x32xbf16>
    %203 = arith.truncf %201 : vector<16x64xf32> to vector<16x64xbf16>
    %cst_85 = arith.constant dense<0.000000e+00> : vector<16x32xf32>
    %204 = tpu.matmul %203, %202, %cst_85 {dimension_numbers = #tpu.dot_dimension_numbers<[1], [0], [0], [1], [0, 0, 1, 1], [], []>} : vector<16x64xbf16>, vector<64x32xbf16>, vector<16x32xf32> -> vector<16x32xf32>
    %c128 = arith.constant 128 : index
    %c0_86 = arith.constant 0 : index
    %205 = vector.load %arg1[%c128, %c0_86] : memref<264x128xf32, #tpu.memory_space<vmem>>, vector<1x32xf32>
    %206 = vector.broadcast %205 : vector<1x32xf32> to vector<16x32xf32>
    %207 = arith.addf %204, %206 : vector<16x32xf32>
    %208 = arith.addf %193, %207 : vector<16x32xf32>
    %cst_87 = arith.constant dense<0.000000e+00> : vector<16xf32>
    %209 = vector.multi_reduction <add>, %208, %cst_87 [1] : vector<16x32xf32> to vector<16xf32>
    %210 = vector.shape_cast %209 : vector<16xf32> to vector<16x1xf32>
    %cst_88 = arith.constant 3.200000e+01 : f32
    %211 = vector.broadcast %cst_88 : f32 to vector<16x1xf32>
    %212 = arith.divf %210, %211 : vector<16x1xf32>
    %213 = vector.broadcast %212 : vector<16x1xf32> to vector<16x32xf32>
    %214 = arith.subf %208, %213 : vector<16x32xf32>
    %215 = arith.mulf %214, %214 : vector<16x32xf32>
    %cst_89 = arith.constant dense<0.000000e+00> : vector<16xf32>
    %216 = vector.multi_reduction <add>, %215, %cst_89 [1] : vector<16x32xf32> to vector<16xf32>
    %217 = vector.shape_cast %216 : vector<16xf32> to vector<16x1xf32>
    %cst_90 = arith.constant 3.200000e+01 : f32
    %218 = vector.broadcast %cst_90 : f32 to vector<16x1xf32>
    %219 = arith.divf %217, %218 : vector<16x1xf32>
    %cst_91 = arith.constant 9.99999974E-6 : f32
    %220 = vector.broadcast %cst_91 : f32 to vector<16x1xf32>
    %221 = arith.addf %219, %220 : vector<16x1xf32>
    %222 = math.rsqrt %221 : vector<16x1xf32>
    %223 = vector.broadcast %222 : vector<16x1xf32> to vector<16x32xf32>
    %224 = arith.mulf %214, %223 : vector<16x32xf32>
    %c104 = arith.constant 104 : index
    %c0_92 = arith.constant 0 : index
    %225 = vector.load %arg1[%c104, %c0_92] : memref<264x128xf32, #tpu.memory_space<vmem>>, vector<1x32xf32>
    %226 = vector.broadcast %225 : vector<1x32xf32> to vector<16x32xf32>
    %227 = arith.mulf %224, %226 : vector<16x32xf32>
    %c112_93 = arith.constant 112 : index
    %c0_94 = arith.constant 0 : index
    %228 = vector.load %arg1[%c112_93, %c0_94] : memref<264x128xf32, #tpu.memory_space<vmem>>, vector<1x32xf32>
    %229 = vector.broadcast %228 : vector<1x32xf32> to vector<16x32xf32>
    %230 = arith.addf %227, %229 : vector<16x32xf32>
    %c400 = arith.constant 400 : index
    %c0_95 = arith.constant 0 : index
    %231 = vector.load %arg0[%c400, %c0_95] : memref<560x128xbf16, #tpu.memory_space<vmem>>, vector<32x32xbf16>
    %232 = arith.truncf %230 : vector<16x32xf32> to vector<16x32xbf16>
    %cst_96 = arith.constant dense<0.000000e+00> : vector<16x32xf32>
    %233 = tpu.matmul %232, %231, %cst_96 {dimension_numbers = #tpu.dot_dimension_numbers<[1], [0], [0], [1], [0, 0, 1, 1], [], []>} : vector<16x32xbf16>, vector<32x32xbf16>, vector<16x32xf32> -> vector<16x32xf32>
    %c136 = arith.constant 136 : index
    %c0_97 = arith.constant 0 : index
    %234 = vector.load %arg1[%c136, %c0_97] : memref<264x128xf32, #tpu.memory_space<vmem>>, vector<1x32xf32>
    %235 = vector.broadcast %234 : vector<1x32xf32> to vector<16x32xf32>
    %236 = arith.addf %233, %235 : vector<16x32xf32>
    %c432 = arith.constant 432 : index
    %c0_98 = arith.constant 0 : index
    %237 = vector.load %arg0[%c432, %c0_98] : memref<560x128xbf16, #tpu.memory_space<vmem>>, vector<32x32xbf16>
    %238 = arith.truncf %236 : vector<16x32xf32> to vector<16x32xbf16>
    %cst_99 = arith.constant dense<0.000000e+00> : vector<16x32xf32>
    %239 = tpu.matmul %238, %237, %cst_99 {dimension_numbers = #tpu.dot_dimension_numbers<[1], [0], [0], [1], [0, 0, 1, 1], [], []>} : vector<16x32xbf16>, vector<32x32xbf16>, vector<16x32xf32> -> vector<16x32xf32>
    %c144_100 = arith.constant 144 : index
    %c0_101 = arith.constant 0 : index
    %240 = vector.load %arg1[%c144_100, %c0_101] : memref<264x128xf32, #tpu.memory_space<vmem>>, vector<1x32xf32>
    %241 = vector.broadcast %240 : vector<1x32xf32> to vector<16x32xf32>
    %242 = arith.addf %239, %241 : vector<16x32xf32>
    %cst_102 = arith.constant 0.000000e+00 : f32
    %243 = vector.broadcast %cst_102 : f32 to vector<16x32xf32>
    %244 = arith.maximumf %242, %243 : vector<16x32xf32>
    %c464 = arith.constant 464 : index
    %c0_103 = arith.constant 0 : index
    %245 = vector.load %arg0[%c464, %c0_103] : memref<560x128xbf16, #tpu.memory_space<vmem>>, vector<32x30xbf16>
    %246 = arith.truncf %244 : vector<16x32xf32> to vector<16x32xbf16>
    %cst_104 = arith.constant dense<0.000000e+00> : vector<16x30xf32>
    %247 = tpu.matmul %246, %245, %cst_104 {dimension_numbers = #tpu.dot_dimension_numbers<[1], [0], [0], [1], [0, 0, 1, 1], [], []>} : vector<16x32xbf16>, vector<32x30xbf16>, vector<16x30xf32> -> vector<16x30xf32>
    %c152 = arith.constant 152 : index
    %c0_105 = arith.constant 0 : index
    %248 = vector.load %arg1[%c152, %c0_105] : memref<264x128xf32, #tpu.memory_space<vmem>>, vector<1x30xf32>
    %249 = vector.broadcast %248 : vector<1x30xf32> to vector<16x30xf32>
    %250 = arith.addf %247, %249 : vector<16x30xf32>
    %c176_106 = arith.constant 176 : index
    %c0_107 = arith.constant 0 : index
    %251 = vector.load %arg1[%c176_106, %c0_107] : memref<264x128xf32, #tpu.memory_space<vmem>>, vector<8x30xf32>
    %252 = tpu.concatenate %251, %251 in 0 : vector<8x30xf32>, vector<8x30xf32> -> vector<16x30xf32>
    %c184 = arith.constant 184 : index
    %c0_108 = arith.constant 0 : index
    %253 = vector.load %arg1[%c184, %c0_108] : memref<264x128xf32, #tpu.memory_space<vmem>>, vector<1x30xf32>
    %cst_109 = arith.constant 5.000000e-01 : f32
    %254 = vector.broadcast %cst_109 : f32 to vector<1x30xf32>
    %255 = arith.cmpf ogt, %253, %254 : vector<1x30xf32>
    %c192 = arith.constant 192 : index
    %c0_110 = arith.constant 0 : index
    %256 = vector.load %arg1[%c192, %c0_110] : memref<264x128xf32, #tpu.memory_space<vmem>>, vector<1x30xf32>
    %cst_111 = arith.constant 5.000000e-01 : f32
    %257 = vector.broadcast %cst_111 : f32 to vector<1x30xf32>
    %258 = arith.cmpf ogt, %256, %257 : vector<1x30xf32>
    %259 = arith.addf %250, %252 : vector<16x30xf32>
    %260 = math.exp %250 : vector<16x30xf32>
    %261 = math.tanh %250 : vector<16x30xf32>
    %262 = vector.shape_cast %258 : vector<1x30xi1> to vector<1x30xi1>
    %263 = vector.broadcast %262 : vector<1x30xi1> to vector<16x30xi1>
    %264 = arith.select %263, %260, %261 : vector<16x30xi1>, vector<16x30xf32>
    %265 = vector.shape_cast %255 : vector<1x30xi1> to vector<1x30xi1>
    %266 = vector.broadcast %265 : vector<1x30xi1> to vector<16x30xi1>
    %267 = arith.select %266, %259, %264 : vector<16x30xi1>, vector<16x30xf32>
    %c496 = arith.constant 496 : index
    %c0_112 = arith.constant 0 : index
    %268 = vector.load %arg0[%c496, %c0_112] : memref<560x128xbf16, #tpu.memory_space<vmem>>, vector<32x32xbf16>
    %269 = arith.truncf %236 : vector<16x32xf32> to vector<16x32xbf16>
    %cst_113 = arith.constant dense<0.000000e+00> : vector<16x32xf32>
    %270 = tpu.matmul %269, %268, %cst_113 {dimension_numbers = #tpu.dot_dimension_numbers<[1], [0], [0], [1], [0, 0, 1, 1], [], []>} : vector<16x32xbf16>, vector<32x32xbf16>, vector<16x32xf32> -> vector<16x32xf32>
    %c160 = arith.constant 160 : index
    %c0_114 = arith.constant 0 : index
    %271 = vector.load %arg1[%c160, %c0_114] : memref<264x128xf32, #tpu.memory_space<vmem>>, vector<1x32xf32>
    %272 = vector.broadcast %271 : vector<1x32xf32> to vector<16x32xf32>
    %273 = arith.addf %270, %272 : vector<16x32xf32>
    %cst_115 = arith.constant 0.000000e+00 : f32
    %274 = vector.broadcast %cst_115 : f32 to vector<16x32xf32>
    %275 = arith.maximumf %273, %274 : vector<16x32xf32>
    %c528 = arith.constant 528 : index
    %c0_116 = arith.constant 0 : index
    %276 = vector.load %arg0[%c528, %c0_116] : memref<560x128xbf16, #tpu.memory_space<vmem>>, vector<32x1xbf16>
    %277 = arith.truncf %275 : vector<16x32xf32> to vector<16x32xbf16>
    %cst_117 = arith.constant dense<0.000000e+00> : vector<16x1xf32>
    %278 = tpu.matmul %277, %276, %cst_117 {dimension_numbers = #tpu.dot_dimension_numbers<[1], [0], [0], [1], [0, 0, 1, 1], [], []>} : vector<16x32xbf16>, vector<32x1xbf16>, vector<16x1xf32> -> vector<16x1xf32>
    %c168 = arith.constant 168 : index
    %c0_118 = arith.constant 0 : index
    %279 = vector.load %arg1[%c168, %c0_118] : memref<264x128xf32, #tpu.memory_space<vmem>>, vector<1x1xf32>
    %280 = vector.broadcast %279 : vector<1x1xf32> to vector<16x1xf32>
    %281 = arith.addf %278, %280 : vector<16x1xf32>
    %cst_119 = arith.constant dense<0xFF800000> : vector<1xf32>
    %282 = vector.multi_reduction <maximumf>, %281, %cst_119 [0] : vector<16x1xf32> to vector<1xf32>
    %283 = vector.shape_cast %282 : vector<1xf32> to vector<1x1xf32>
    %284 = vector.broadcast %283 : vector<1x1xf32> to vector<16x1xf32>
    %285 = arith.subf %281, %284 : vector<16x1xf32>
    %286 = math.exp %285 : vector<16x1xf32>
    %c248 = arith.constant 248 : index
    %c0_120 = arith.constant 0 : index
    %287 = vector.load %arg1[%c248, %c0_120] : memref<264x128xf32, #tpu.memory_space<vmem>>, vector<16x16xf32>
    %cst_121 = arith.constant dense<0.000000e+00> : vector<16x1xf32>
    %288 = tpu.matmul %287, %286, %cst_121 {dimension_numbers = #tpu.dot_dimension_numbers<[1], [0], [0], [1], [0, 0, 1, 1], [], []>} : vector<16x16xf32>, vector<16x1xf32>, vector<16x1xf32> -> vector<16x1xf32>
    %289 = math.log %288 : vector<16x1xf32>
    %290 = arith.subf %285, %289 : vector<16x1xf32>
    %291 = tpu.concatenate %267, %290 in 1 : vector<16x30xf32>, vector<16x1xf32> -> vector<16x31xf32>
    %c0_122 = arith.constant 0 : index
    %c0_123 = arith.constant 0 : index
    %292 = vector.load %arg4[%c0_122, %c0_123] : memref<16x31xf32, #tpu.memory_space<vmem>>, vector<16x31xf32>
    tpu.vector_store %arg4[%c0_122, %c0_123], %291 {strides = array<i32>} : memref<16x31xf32, #tpu.memory_space<vmem>>, vector<16x31xf32>,
    return
  }
}

</mosaic_0001>

<llo_original>
// kernel: tpu_custom_call.1
$region0: #{tpu_custom_call.1}
  #allocation0 [shape = 'u32[]', space=smem, size = 0x4, offset = 0x4, fixed_abs, tag = 'smem constant byte address 0x4 - core index']
  #allocation1 [shape = 'u32[144,128]{1,0:T(1,128)}', space=vmem, size = 0x12000, scoped, tag = 'internal scratch']
  %s0 = inlined_call_operand.hbm [shape: bf16[560,128], index: 0, kind: input, shape index: {}]
  %s1 = inlined_call_operand.hbm [shape: f32[264,128], index: 1, kind: input, shape index: {}]
  %s2 = inlined_call_operand.hbm [shape: bf16[16,32], index: 2, kind: input, shape index: {}]
  %s3 = inlined_call_operand.hbm [shape: f32[16,16], index: 3, kind: input, shape index: {}]
  %s4 = inlined_call_operand.hbm [shape: f32[16,31], index: 4, kind: output, shape index: {}]
  %s5 = sld [smem:[#allocation0]]
  $region42: #{tpu_custom_call.1} parent=0
    _
  %s7 = ssub.s32 1, %s5
  %s8 = scalar_select 0, %s7, %s5
  $region1: #{tpu_custom_call.1} parent=0
    #allocation2 [shape = 'u8[143360]{0}', space=vmem, size = 0x23000, scoped, tag = 'input window, operand 0, single buffered']
    #allocation3 [shape = 's32[1]{0}', space=sflag, size = 0x4, scoped, tag = 'scoped memory for tpu_custom_call.1']
    #allocation4 [shape = 's32[1]{0}', space=sflag, size = 0x4, scoped, tag = 'scoped memory for tpu_custom_call.1']
    #allocation5 [shape = 'u8[135168]{0}', space=vmem, size = 0x21000, scoped, tag = 'input window, operand 1, single buffered']
    #allocation6 [shape = 's32[1]{0}', space=sflag, size = 0x4, scoped, tag = 'scoped memory for tpu_custom_call.1']
    #allocation7 [shape = 'u8[4096]{0}', space=vmem, size = 0x1000, scoped, tag = 'input window, operand 2, single buffered']
    #allocation8 [shape = 'u8[8192]{0}', space=vmem, size = 0x2000, scoped, tag = 'input window, operand 3, single buffered']
    #allocation9 [shape = 's32[1]{0}', space=sflag, size = 0x4, scoped, tag = 'scoped memory for tpu_custom_call.1']
    #allocation10 [shape = 'u8[8192]{0}', space=vmem, size = 0x2000, scoped, tag = 'output window, operand 0, single buffered']
    %9 = vsyncpa [#allocation3], 0
    %10 = vsyncpa [#allocation6], 0
    %11 = vsyncpa [#allocation9], 0
    %12 = vsyncpa [#allocation4], 0
    // Predicated region
    $region2: #{tpu_custom_call.1} parent=1 // pred_check
      _
    $region3: #{tpu_custom_call.1} parent=1 // pred_check_branch
      %14 = sbr.rel (0) target = $region5
    $region4: #{tpu_custom_call.1} parent=1 // pred_region
      %s16 = ssub.s32 4480, 4480
      %17 = vsyncadd [#allocation3], %s16
      %s18 = sshll.u32 [#allocation2], 4
      %s19 = int_to_ptr.vmem [resolvable:$true] %s18
      %24 = dma.hbm_to_vmem [thread:$0]  %s0, 4480, %s19, [#allocation3], 64, 64, 4
    $region5: #{tpu_custom_call.1} parent=1 // pred_fallthru
      _
    // Predicated region
    $region6: #{tpu_custom_call.1} parent=1 // pred_check
      _
    $region7: #{tpu_custom_call.1} parent=1 // pred_check_branch
      %26 = sbr.rel (0) target = $region9
    $region8: #{tpu_custom_call.1} parent=1 // pred_region
      %s28 = ssub.s32 4224, 4224
      %29 = vsyncadd [#allocation6], %s28
      %s30 = sshll.u32 [#allocation5], 4
      %s31 = int_to_ptr.vmem [resolvable:$true] %s30
      %36 = dma.hbm_to_vmem [thread:$0]  %s1, 4224, %s31, [#allocation6], 128, 128, 8
    $region9: #{tpu_custom_call.1} parent=1 // pred_fallthru
      _
    // Predicated region
    $region10: #{tpu_custom_call.1} parent=1 // pred_check
      _
    $region11: #{tpu_custom_call.1} parent=1 // pred_check_branch
      %38 = sbr.rel (0) target = $region13
    $region12: #{tpu_custom_call.1} parent=1 // pred_region
      %s40 = ssub.s32 128, 128
      %41 = vsyncadd [#allocation6], %s40
      %s42 = sshll.u32 [#allocation7], 4
      %s43 = int_to_ptr.vmem [resolvable:$true] %s42
      %48 = dma.hbm_to_vmem [thread:$0]  %s2, 128, %s43, [#allocation6], 64, 64, 4
    $region13: #{tpu_custom_call.1} parent=1 // pred_fallthru
      _
    // Predicated region
    $region14: #{tpu_custom_call.1} parent=1 // pred_check
      _
    $region15: #{tpu_custom_call.1} parent=1 // pred_check_branch
      %50 = sbr.rel (0) target = $region17
    $region16: #{tpu_custom_call.1} parent=1 // pred_region
      %s52 = ssub.s32 256, 256
      %53 = vsyncadd [#allocation9], %s52
      %s54 = sshll.u32 [#allocation8], 4
      %s55 = int_to_ptr.vmem [resolvable:$true] %s54
      %60 = dma.hbm_to_vmem [thread:$0]  %s3, 256, %s55, [#allocation9], 128, 128, 8
    $region17: #{tpu_custom_call.1} parent=1 // pred_fallthru
      _
    // Predicated region
    $region18: #{tpu_custom_call.1} parent=1 // pred_check
      _
    $region19: #{tpu_custom_call.1} parent=1 // pred_check_branch
      %62 = sbr.rel (0) target = $region21
    $region20: #{tpu_custom_call.1} parent=1 // pred_region
      %63 = dma.done [#allocation3], 4480
    $region21: #{tpu_custom_call.1} parent=1 // pred_fallthru
      _
    // Predicated region
    $region22: #{tpu_custom_call.1} parent=1 // pred_check
      _
    $region23: #{tpu_custom_call.1} parent=1 // pred_check_branch
      %65 = sbr.rel (0) target = $region25
    $region24: #{tpu_custom_call.1} parent=1 // pred_region
      %66 = dma.done [#allocation6], 4224
    $region25: #{tpu_custom_call.1} parent=1 // pred_fallthru
      _
    // Predicated region
    $region26: #{tpu_custom_call.1} parent=1 // pred_check
      _
    $region27: #{tpu_custom_call.1} parent=1 // pred_check_branch
      %68 = sbr.rel (0) target = $region29
    $region28: #{tpu_custom_call.1} parent=1 // pred_region
      %69 = dma.done [#allocation6], 128
    $region29: #{tpu_custom_call.1} parent=1 // pred_fallthru
      _
    // Predicated region
    $region30: #{tpu_custom_call.1} parent=1 // pred_check
      _
    $region31: #{tpu_custom_call.1} parent=1 // pred_check_branch
      %71 = sbr.rel (0) target = $region33
    $region32: #{tpu_custom_call.1} parent=1 // pred_region
      %72 = dma.done [#allocation9], 256
    $region33: #{tpu_custom_call.1} parent=1 // pred_fallthru
      _
    %v74 = vld [vmem:[#allocation7] sm:$0xf]
    %v75 = vld [vmem:[#allocation7 + $0x4] sm:$0xf]
    %v76 = vld [vmem:[#allocation8] sm:$0xff]
    %v77 = vld [vmem:[#allocation8 + $0x8] sm:$0xff]
    %v78 = vld [vmem:[#allocation5 + $0xe8] sm:$0xff]
    %v79 = vld [vmem:[#allocation5 + $0xf0] sm:$0xff]
    %v80 = vld [vmem:[#allocation2] sm:$0xf]
    %v81 = vld [vmem:[#allocation2 + $0x8] sm:$0xf]
    %v82 = vld [vmem:[#allocation2 + $0xc] sm:$0xf]
    %v83 = vld [vmem:[#allocation2 + $0x10] sm:$0xf]
    %v84 = vld [vmem:[#allocation5] sm:$0x1]
    %v85 = vlaneseq
    %v86 = vshrl.u32 %v85, 7
    %v87 = vsub.s32 0, %v86
    %v88 = vrot.slane %v84, %v87
    %v92 = vunpack.c.l.b16 %v81
    %v93 = vunpack.c.l.b16 %v82
    %v94 = vunpack.c.l.b16 %v83
    %v95 = vpack.c.b16 %v93, %v92
    %v96 = vpack.c.b16 %v94, %v94
    %vm98 = vcmask 195584
    %v100 = vsel %vm98, %v80, 0
    %vm102 = vcmask 1043456
    %v104 = vsel %vm102, %v96, 0
    %106 = vmatprep.subr.bf16.mxu0 0
    %107 = vmatpush1.bf16.msra.mxu0 %v95
    %108 = vmatprep.subr.bf16.mxu0 0
    %109 = vmatpush1.bf16.msra.mxu0 %v104
    %110 = vmatprep.subr.bf16.mxu0 0
    %111 = vmatpush1.bf16.msra.mxu0 0
    %112 = vmatprep.subr.bf16.mxu0 0
    %113 = vmatpush1.bf16.msra.mxu0 0
    %114 = vmatprep.subr.bf16.mxu0 0
    %115 = vmatpush1.bf16.msra.mxu0 0
    %116 = vmatprep.subr.bf16.mxu0 0
    %117 = vmatpush1.bf16.msra.mxu0 0
    %118 = vmatprep.subr.bf16.mxu0 0
    %119 = vmatpush1.bf16.msra.mxu0 0
    %120 = vmatprep.subr.bf16.mxu0 0
    %121 = vmatpush1.bf16.msra.mxu0 0
    %122 = vmatprep.subr.bf16.mxu0 0
    %123 = vmatpush1.bf16.msra.mxu0 0
    %124 = vmatprep.subr.bf16.mxu0 0
    %125 = vmatpush1.bf16.msra.mxu0 0
    %126 = vmatprep.subr.bf16.mxu0 0
    %127 = vmatpush1.bf16.msra.mxu0 0
    %128 = vmatprep.subr.bf16.mxu0 0
    %129 = vmatpush1.bf16.msra.mxu0 0
    %130 = vmatprep.subr.bf16.mxu0 0
    %131 = vmatpush1.bf16.msra.mxu0 0
    %132 = vmatprep.subr.bf16.mxu0 0
    %133 = vmatpush1.bf16.msra.mxu0 0
    %134 = vmatprep.subr.bf16.mxu0 0
    %135 = vmatpush1.bf16.msra.mxu0 0
    %136 = vmatprep.subr.bf16.mxu0 0
    %137 = vmatpush1.bf16.msra.mxu0 0
    %138 = vmatprep.mubr.bf16.mxu0 0
    %139 = vmatmul.mubr.bf16.gmra.mrb[0].mxu0 %v100
    %v140 = vpop.f32.mrb[0].mxu0
    %v141 = vadd.f32 %v88, %v140
    %v142 = vpop.f32.mrb[0].mxu0
    %v143 = vpop.f32.mrb[0].mxu0
    %v144 = vpop.f32.mrb[0].mxu0
    %145 = vdwg.mxu0
    %v146 = vmax.f32 %v141, 0.0
    %v147 = vld [vmem:[#allocation2 + $0x28] sm:$0xf]
    %v148 = vld [vmem:[#allocation2 + $0x2c] sm:$0xf]
    %v149 = vld [vmem:[#allocation2 + $0x30] sm:$0xf]
    %v150 = vld [vmem:[#allocation2 + $0x34] sm:$0xf]
    %v151 = vpack.c.bf16 %v146, %v146
    %v152 = vld [vmem:[#allocation5 + $0x10] sm:$0x1]
    %v153 = vlaneseq
    %v154 = vshrl.u32 %v153, 7
    %v155 = vsub.s32 0, %v154
    %v156 = vrot.slane %v152, %v155
    %v161 = vunpack.c.l.b16 %v147
    %v162 = vunpack.c.l.b16 %v148
    %v163 = vunpack.c.l.b16 %v149
    %v164 = vunpack.c.l.b16 %v150
    %v165 = vpack.c.b16 %v162, %v161
    %v166 = vpack.c.b16 %v164, %v163
    %vm169 = vcmask 261120
    %v171 = vsel %vm169, %v151, 0
    %173 = vmatprep.subr.bf16.mxu0 0
    %174 = vmatpush1.bf16.msra.mxu0 %v165
    %175 = vmatprep.subr.bf16.mxu0 0
    %176 = vmatpush1.bf16.msra.mxu0 %v166
    %177 = vmatprep.subr.bf16.mxu0 0
    %178 = vmatpush1.bf16.msra.mxu0 0
    %179 = vmatprep.subr.bf16.mxu0 0
    %180 = vmatpush1.bf16.msra.mxu0 0
    %181 = vmatprep.subr.bf16.mxu0 0
    %182 = vmatpush1.bf16.msra.mxu0 0
    %183 = vmatprep.subr.bf16.mxu0 0
    %184 = vmatpush1.bf16.msra.mxu0 0
    %185 = vmatprep.subr.bf16.mxu0 0
    %186 = vmatpush1.bf16.msra.mxu0 0
    %187 = vmatprep.subr.bf16.mxu0 0
    %188 = vmatpush1.bf16.msra.mxu0 0
    %189 = vmatprep.subr.bf16.mxu0 0
    %190 = vmatpush1.bf16.msra.mxu0 0
    %191 = vmatprep.subr.bf16.mxu0 0
    %192 = vmatpush1.bf16.msra.mxu0 0
    %193 = vmatprep.subr.bf16.mxu0 0
    %194 = vmatpush1.bf16.msra.mxu0 0
    %195 = vmatprep.subr.bf16.mxu0 0
    %196 = vmatpush1.bf16.msra.mxu0 0
    %197 = vmatprep.subr.bf16.mxu0 0
    %198 = vmatpush1.bf16.msra.mxu0 0
    %199 = vmatprep.subr.bf16.mxu0 0
    %200 = vmatpush1.bf16.msra.mxu0 0
    %201 = vmatprep.subr.bf16.mxu0 0
    %202 = vmatpush1.bf16.msra.mxu0 0
    %203 = vmatprep.subr.bf16.mxu0 0
    %204 = vmatpush1.bf16.msra.mxu0 0
    %205 = vmatprep.mubr.bf16.mxu0 0
    %206 = vmatmul.mubr.bf16.gmra.mrb[0].mxu0 %v171
    %v207 = vpop.f32.mrb[0].mxu0
    %v208 = vadd.f32 %v156, %v207
    %v209 = vpop.f32.mrb[0].mxu0
    %v210 = vpop.f32.mrb[0].mxu0
    %v211 = vadd.f32 %v156, %v210
    %v212 = vpop.f32.mrb[0].mxu0
    %213 = vdwg.mxu0
    %v214 = vpack.c.bf16 %v211, %v208
    %v215 = vld [vmem:[#allocation2 + $0x38] sm:$0xf]
    %v216 = vld [vmem:[#allocation2 + $0x3c] sm:$0xf]
    %v217 = vld [vmem:[#allocation2 + $0x40] sm:$0xf]
    %v218 = vld [vmem:[#allocation2 + $0x44] sm:$0xf]
    %v219 = vld [vmem:[#allocation5 + $0x18] sm:$0x1]
    %v220 = vlaneseq
    %v221 = vshrl.u32 %v220, 7
    %v222 = vsub.s32 0, %v221
    %v223 = vrot.slane %v219, %v222
    %v228 = vunpack.c.l.b16 %v215
    %v229 = vunpack.c.l.b16 %v216
    %v230 = vunpack.c.l.b16 %v217
    %v231 = vunpack.c.l.b16 %v218
    %v232 = vpack.c.b16 %v229, %v228
    %v233 = vpack.c.b16 %v231, %v230
    %236 = vmatprep.subr.bf16.mxu0 0
    %237 = vmatpush1.bf16.msra.mxu0 %v232
    %238 = vmatprep.subr.bf16.mxu0 0
    %239 = vmatpush1.bf16.msra.mxu0 %v233
    %240 = vmatprep.subr.bf16.mxu0 0
    %241 = vmatpush1.bf16.msra.mxu0 0
    %242 = vmatprep.subr.bf16.mxu0 0
    %243 = vmatpush1.bf16.msra.mxu0 0
    %244 = vmatprep.subr.bf16.mxu0 0
    %245 = vmatpush1.bf16.msra.mxu0 0
    %246 = vmatprep.subr.bf16.mxu0 0
    %247 = vmatpush1.bf16.msra.mxu0 0
    %248 = vmatprep.subr.bf16.mxu0 0
    %249 = vmatpush1.bf16.msra.mxu0 0
    %250 = vmatprep.subr.bf16.mxu0 0
    %251 = vmatpush1.bf16.msra.mxu0 0
    %252 = vmatprep.subr.bf16.mxu0 0
    %253 = vmatpush1.bf16.msra.mxu0 0
    %254 = vmatprep.subr.bf16.mxu0 0
    %255 = vmatpush1.bf16.msra.mxu0 0
    %256 = vmatprep.subr.bf16.mxu0 0
    %257 = vmatpush1.bf16.msra.mxu0 0
    %258 = vmatprep.subr.bf16.mxu0 0
    %259 = vmatpush1.bf16.msra.mxu0 0
    %260 = vmatprep.subr.bf16.mxu0 0
    %261 = vmatpush1.bf16.msra.mxu0 0
    %262 = vmatprep.subr.bf16.mxu0 0
    %263 = vmatpush1.bf16.msra.mxu0 0
    %264 = vmatprep.subr.bf16.mxu0 0
    %265 = vmatpush1.bf16.msra.mxu0 0
    %266 = vmatprep.subr.bf16.mxu0 0
    %267 = vmatpush1.bf16.msra.mxu0 0
    %268 = vmatprep.mubr.bf16.mxu0 0
    %269 = vmatmul.mubr.bf16.gmra.mrb[0].mxu0 %v171
    %v270 = vpop.f32.mrb[0].mxu0
    %v271 = vadd.f32 %v223, %v270
    %v272 = vpop.f32.mrb[0].mxu0
    %v273 = vpop.f32.mrb[0].mxu0
    %v274 = vadd.f32 %v223, %v273
    %v275 = vpop.f32.mrb[0].mxu0
    %276 = vdwg.mxu0
    %v277 = vpack.c.bf16 %v274, %v271
    %v278 = vld [vmem:[#allocation2 + $0x18] sm:$0xf]
    %v279 = vld [vmem:[#allocation2 + $0x1c] sm:$0xf]
    %v280 = vld [vmem:[#allocation2 + $0x20] sm:$0xf]
    %v281 = vld [vmem:[#allocation2 + $0x24] sm:$0xf]
    %v282 = vld [vmem:[#allocation5 + $0x8] sm:$0x1]
    %v283 = vlaneseq
    %v284 = vshrl.u32 %v283, 7
    %v285 = vsub.s32 0, %v284
    %v286 = vrot.slane %v282, %v285
    %v291 = vunpack.c.l.b16 %v278
    %v292 = vunpack.c.l.b16 %v279
    %v293 = vunpack.c.l.b16 %v280
    %v294 = vunpack.c.l.b16 %v281
    %v295 = vpack.c.b16 %v292, %v291
    %v296 = vpack.c.b16 %v294, %v293
    %299 = vmatprep.subr.bf16.mxu0 0
    %300 = vmatpush1.bf16.msra.mxu0 %v295
    %301 = vmatprep.subr.bf16.mxu0 0
    %302 = vmatpush1.bf16.msra.mxu0 %v296
    %303 = vmatprep.subr.bf16.mxu0 0
    %304 = vmatpush1.bf16.msra.mxu0 0
    %305 = vmatprep.subr.bf16.mxu0 0
    %306 = vmatpush1.bf16.msra.mxu0 0
    %307 = vmatprep.subr.bf16.mxu0 0
    %308 = vmatpush1.bf16.msra.mxu0 0
    %309 = vmatprep.subr.bf16.mxu0 0
    %310 = vmatpush1.bf16.msra.mxu0 0
    %311 = vmatprep.subr.bf16.mxu0 0
    %312 = vmatpush1.bf16.msra.mxu0 0
    %313 = vmatprep.subr.bf16.mxu0 0
    %314 = vmatpush1.bf16.msra.mxu0 0
    %315 = vmatprep.subr.bf16.mxu0 0
    %316 = vmatpush1.bf16.msra.mxu0 0
    %317 = vmatprep.subr.bf16.mxu0 0
    %318 = vmatpush1.bf16.msra.mxu0 0
    %319 = vmatprep.subr.bf16.mxu0 0
    %320 = vmatpush1.bf16.msra.mxu0 0
    %321 = vmatprep.subr.bf16.mxu0 0
    %322 = vmatpush1.bf16.msra.mxu0 0
    %323 = vmatprep.subr.bf16.mxu0 0
    %324 = vmatpush1.bf16.msra.mxu0 0
    %325 = vmatprep.subr.bf16.mxu0 0
    %326 = vmatpush1.bf16.msra.mxu0 0
    %327 = vmatprep.subr.bf16.mxu0 0
    %328 = vmatpush1.bf16.msra.mxu0 0
    %329 = vmatprep.subr.bf16.mxu0 0
    %330 = vmatpush1.bf16.msra.mxu0 0
    %331 = vmatprep.mubr.bf16.mxu0 0
    %332 = vmatmul.mubr.bf16.gmra.mrb[0].mxu0 %v171
    %v333 = vpop.f32.mrb[0].mxu0
    %v334 = vadd.f32 %v286, %v333
    %v335 = vpop.f32.mrb[0].mxu0
    %v336 = vpop.f32.mrb[0].mxu0
    %v337 = vadd.f32 %v286, %v336
    %v338 = vpop.f32.mrb[0].mxu0
    %339 = vdwg.mxu0
    %v340 = vld [vmem:[#allocation5 + $0xc8] sm:$0x1]
    %v341 = vlaneseq
    %v342 = vshrl.u32 %v341, 7
    %v343 = vsub.s32 0, %v342
    %v344 = vrot.slane %v340, %v343
    %v345 = vmul.f32 %v334, %v344
    %v346 = vmul.f32 %v337, %v344
    %v347 = vpack.c.bf16 %v346, %v345
    %v349 = vsel %vm169, %v347, 0
    %v352 = vsel %vm169, %v214, 0
    %354 = vmatprep.subr.bf16.mxu0 0
    %355 = vmatpush1.bf16.xpose.msra.mxu0 %v352
    %356 = vmatprep.subr.bf16.mxu0 0
    %357 = vmatpush1.bf16.xpose.msra.mxu0 0
    %358 = vmatprep.subr.bf16.mxu0 0
    %359 = vmatpush1.bf16.xpose.msra.mxu0 0
    %360 = vmatprep.subr.bf16.mxu0 0
    %361 = vmatpush1.bf16.xpose.msra.mxu0 0
    %362 = vmatprep.subr.bf16.mxu0 0
    %363 = vmatpush1.bf16.xpose.msra.mxu0 0
    %364 = vmatprep.subr.bf16.mxu0 0
    %365 = vmatpush1.bf16.xpose.msra.mxu0 0
    %366 = vmatprep.subr.bf16.mxu0 0
    %367 = vmatpush1.bf16.xpose.msra.mxu0 0
    %368 = vmatprep.subr.bf16.mxu0 0
    %369 = vmatpush1.bf16.xpose.msra.mxu0 0
    %370 = vmatprep.subr.bf16.mxu0 0
    %371 = vmatpush1.bf16.xpose.msra.mxu0 0
    %372 = vmatprep.subr.bf16.mxu0 0
    %373 = vmatpush1.bf16.xpose.msra.mxu0 0
    %374 = vmatprep.subr.bf16.mxu0 0
    %375 = vmatpush1.bf16.xpose.msra.mxu0 0
    %376 = vmatprep.subr.bf16.mxu0 0
    %377 = vmatpush1.bf16.xpose.msra.mxu0 0
    %378 = vmatprep.subr.bf16.mxu0 0
    %379 = vmatpush1.bf16.xpose.msra.mxu0 0
    %380 = vmatprep.subr.bf16.mxu0 0
    %381 = vmatpush1.bf16.xpose.msra.mxu0 0
    %382 = vmatprep.subr.bf16.mxu0 0
    %383 = vmatpush1.bf16.xpose.msra.mxu0 0
    %384 = vmatprep.subr.bf16.mxu0 0
    %385 = vmatpush1.bf16.xpose.msra.mxu0 0
    %386 = vmatprep.mubr.bf16.mxu0 0
    %387 = vmatmul.mubr.bf16.gmra.mrb[0].mxu0 %v349
    %v388 = vpop.f32.mrb[0].mxu0
    %v389 = vadd.f32 %v78, %v388
    %v390 = vpop.f32.mrb[0].mxu0
    %v391 = vpop.f32.mrb[0].mxu0
    %v392 = vadd.f32 %v79, %v391
    %v393 = vpop.f32.mrb[0].mxu0
    %394 = vdwg.mxu0
    %vm395 = vcmask 130048
    %v396 = vsel %vm395, %v389, -inf
    %397 = vmax.xlane.f32.xlu0 %v396
    %v398 = vpop.xlane.xlu0 %397
    %v399 = vsel %vm395, %v392, -inf
    %400 = vmax.xlane.f32.xlu0 %v399
    %v401 = vpop.xlane.xlu0 %400
    %v402 = vsub.f32 %v389, %v398
    %v403 = vsub.f32 %v392, %v401
    %v404 = vmul.f32 %v402, 1.442695
    %v405 = vpow.pop %v404
    %v406 = vmul.f32 %v403, 1.442695
    %v407 = vpow.pop %v406
    %v408 = vsel %vm395, %v405, 0.0
    %409 = vadd.xlane.f32.xlu0 %v408
    %v410 = vpop.xlane.xlu0 %409
    %v411 = vsel %vm395, %v407, 0.0
    %412 = vadd.xlane.f32.xlu0 %v411
    %v413 = vpop.xlane.xlu0 %412
    %v414 = vrcp.pop %v410
    %v415 = vrcp.pop %v413
    %v416 = vmul.f32 %v405, %v414
    %v417 = vmul.f32 %v407, %v415
    %v418 = vpack.c.bf16 %v417, %v416
    %v420 = vsel %vm395, %v418, 0
    %422 = vmatprep.subr.bf16.mxu0 0
    %423 = vmatpush1.bf16.msra.mxu0 %v277
    %424 = vmatprep.subr.bf16.mxu0 0
    %425 = vmatpush1.bf16.msra.mxu0 0
    %426 = vmatprep.subr.bf16.mxu0 0
    %427 = vmatpush1.bf16.msra.mxu0 0
    %428 = vmatprep.subr.bf16.mxu0 0
    %429 = vmatpush1.bf16.msra.mxu0 0
    %430 = vmatprep.subr.bf16.mxu0 0
    %431 = vmatpush1.bf16.msra.mxu0 0
    %432 = vmatprep.subr.bf16.mxu0 0
    %433 = vmatpush1.bf16.msra.mxu0 0
    %434 = vmatprep.subr.bf16.mxu0 0
    %435 = vmatpush1.bf16.msra.mxu0 0
    %436 = vmatprep.subr.bf16.mxu0 0
    %437 = vmatpush1.bf16.msra.mxu0 0
    %438 = vmatprep.subr.bf16.mxu0 0
    %439 = vmatpush1.bf16.msra.mxu0 0
    %440 = vmatprep.subr.bf16.mxu0 0
    %441 = vmatpush1.bf16.msra.mxu0 0
    %442 = vmatprep.subr.bf16.mxu0 0
    %443 = vmatpush1.bf16.msra.mxu0 0
    %444 = vmatprep.subr.bf16.mxu0 0
    %445 = vmatpush1.bf16.msra.mxu0 0
    %446 = vmatprep.subr.bf16.mxu0 0
    %447 = vmatpush1.bf16.msra.mxu0 0
    %448 = vmatprep.subr.bf16.mxu0 0
    %449 = vmatpush1.bf16.msra.mxu0 0
    %450 = vmatprep.subr.bf16.mxu0 0
    %451 = vmatpush1.bf16.msra.mxu0 0
    %452 = vmatprep.subr.bf16.mxu0 0
    %453 = vmatpush1.bf16.msra.mxu0 0
    %454 = vmatprep.mubr.bf16.mxu0 0
    %455 = vmatmul.mubr.bf16.gmra.mrb[0].mxu0 %v420
    %v456 = vpop.f32.mrb[0].mxu0
    %v457 = vadd.f32 0.0, %v456
    %v458 = vpop.f32.mrb[0].mxu0
    %v459 = vpop.f32.mrb[0].mxu0
    %v460 = vadd.f32 0.0, %v459
    %v461 = vpop.f32.mrb[0].mxu0
    %462 = vdwg.mxu0
    %v463 = vld [vmem:[#allocation5 + $0xd0] sm:$0x1]
    %v464 = vlaneseq
    %v465 = vshrl.u32 %v464, 7
    %v466 = vsub.s32 0, %v465
    %v467 = vrot.slane %v463, %v466
    %v468 = vmul.f32 %v457, %v467
    %v469 = vmul.f32 %v460, %v467
    %v470 = vld [vmem:[#allocation5 + $0xd8] sm:$0x1]
    %v471 = vlaneseq
    %v472 = vshrl.u32 %v471, 7
    %v473 = vsub.s32 0, %v472
    %v474 = vrot.slane %v470, %v473
    %v475 = vmul.f32 %v334, %v474
    %v476 = vmul.f32 %v337, %v474
    %v477 = vpack.c.bf16 %v476, %v475
    %v479 = vsel %vm169, %v477, 0
    %481 = vmatprep.subr.bf16.mxu0 0
    %482 = vmatpush1.bf16.xpose.msra.mxu0 %v352
    %483 = vmatprep.subr.bf16.mxu0 0
    %484 = vmatpush1.bf16.xpose.msra.mxu0 0
    %485 = vmatprep.subr.bf16.mxu0 0
    %486 = vmatpush1.bf16.xpose.msra.mxu0 0
    %487 = vmatprep.subr.bf16.mxu0 0
    %488 = vmatpush1.bf16.xpose.msra.mxu0 0
    %489 = vmatprep.subr.bf16.mxu0 0
    %490 = vmatpush1.bf16.xpose.msra.mxu0 0
    %491 = vmatprep.subr.bf16.mxu0 0
    %492 = vmatpush1.bf16.xpose.msra.mxu0 0
    %493 = vmatprep.subr.bf16.mxu0 0
    %494 = vmatpush1.bf16.xpose.msra.mxu0 0
    %495 = vmatprep.subr.bf16.mxu0 0
    %496 = vmatpush1.bf16.xpose.msra.mxu0 0
    %497 = vmatprep.subr.bf16.mxu0 0
    %498 = vmatpush1.bf16.xpose.msra.mxu0 0
    %499 = vmatprep.subr.bf16.mxu0 0
    %500 = vmatpush1.bf16.xpose.msra.mxu0 0
    %501 = vmatprep.subr.bf16.mxu0 0
    %502 = vmatpush1.bf16.xpose.msra.mxu0 0
    %503 = vmatprep.subr.bf16.mxu0 0
    %504 = vmatpush1.bf16.xpose.msra.mxu0 0
    %505 = vmatprep.subr.bf16.mxu0 0
    %506 = vmatpush1.bf16.xpose.msra.mxu0 0
    %507 = vmatprep.subr.bf16.mxu0 0
    %508 = vmatpush1.bf16.xpose.msra.mxu0 0
    %509 = vmatprep.subr.bf16.mxu0 0
    %510 = vmatpush1.bf16.xpose.msra.mxu0 0
    %511 = vmatprep.subr.bf16.mxu0 0
    %512 = vmatpush1.bf16.xpose.msra.mxu0 0
    %513 = vmatprep.mubr.bf16.mxu0 0
    %514 = vmatmul.mubr.bf16.gmra.mrb[0].mxu0 %v479
    %v515 = vpop.f32.mrb[0].mxu0
    %v516 = vadd.f32 %v78, %v515
    %v517 = vpop.f32.mrb[0].mxu0
    %v518 = vpop.f32.mrb[0].mxu0
    %v519 = vadd.f32 %v79, %v518
    %v520 = vpop.f32.mrb[0].mxu0
    %521 = vdwg.mxu0
    %v522 = vsel %vm395, %v516, -inf
    %523 = vmax.xlane.f32.xlu0 %v522
    %v524 = vpop.xlane.xlu0 %523
    %v525 = vsel %vm395, %v519, -inf
    %526 = vmax.xlane.f32.xlu0 %v525
    %v527 = vpop.xlane.xlu0 %526
    %v528 = vsub.f32 %v516, %v524
    %v529 = vsub.f32 %v519, %v527
    %v530 = vmul.f32 %v528, 1.442695
    %v531 = vpow.pop %v530
    %v532 = vmul.f32 %v529, 1.442695
    %v533 = vpow.pop %v532
    %v534 = vsel %vm395, %v531, 0.0
    %535 = vadd.xlane.f32.xlu0 %v534
    %v536 = vpop.xlane.xlu0 %535
    %v537 = vsel %vm395, %v533, 0.0
    %538 = vadd.xlane.f32.xlu0 %v537
    %v539 = vpop.xlane.xlu0 %538
    %v540 = vrcp.pop %v536
    %v541 = vrcp.pop %v539
    %v542 = vmul.f32 %v531, %v540
    %v543 = vmul.f32 %v533, %v541
    %v544 = vpack.c.bf16 %v543, %v542
    %v546 = vsel %vm395, %v544, 0
    %548 = vmatprep.subr.bf16.mxu0 0
    %549 = vmatpush1.bf16.msra.mxu0 %v277
    %550 = vmatprep.subr.bf16.mxu0 0
    %551 = vmatpush1.bf16.msra.mxu0 0
    %552 = vmatprep.subr.bf16.mxu0 0
    %553 = vmatpush1.bf16.msra.mxu0 0
    %554 = vmatprep.subr.bf16.mxu0 0
    %555 = vmatpush1.bf16.msra.mxu0 0
    %556 = vmatprep.subr.bf16.mxu0 0
    %557 = vmatpush1.bf16.msra.mxu0 0
    %558 = vmatprep.subr.bf16.mxu0 0
    %559 = vmatpush1.bf16.msra.mxu0 0
    %560 = vmatprep.subr.bf16.mxu0 0
    %561 = vmatpush1.bf16.msra.mxu0 0
    %562 = vmatprep.subr.bf16.mxu0 0
    %563 = vmatpush1.bf16.msra.mxu0 0
    %564 = vmatprep.subr.bf16.mxu0 0
    %565 = vmatpush1.bf16.msra.mxu0 0
    %566 = vmatprep.subr.bf16.mxu0 0
    %567 = vmatpush1.bf16.msra.mxu0 0
    %568 = vmatprep.subr.bf16.mxu0 0
    %569 = vmatpush1.bf16.msra.mxu0 0
    %570 = vmatprep.subr.bf16.mxu0 0
    %571 = vmatpush1.bf16.msra.mxu0 0
    %572 = vmatprep.subr.bf16.mxu0 0
    %573 = vmatpush1.bf16.msra.mxu0 0
    %574 = vmatprep.subr.bf16.mxu0 0
    %575 = vmatpush1.bf16.msra.mxu0 0
    %576 = vmatprep.subr.bf16.mxu0 0
    %577 = vmatpush1.bf16.msra.mxu0 0
    %578 = vmatprep.subr.bf16.mxu0 0
    %579 = vmatpush1.bf16.msra.mxu0 0
    %580 = vmatprep.mubr.bf16.mxu0 0
    %581 = vmatmul.mubr.bf16.gmra.mrb[0].mxu0 %v546
    %v582 = vpop.f32.mrb[0].mxu0
    %v583 = vadd.f32 0.0, %v582
    %v584 = vpop.f32.mrb[0].mxu0
    %v585 = vpop.f32.mrb[0].mxu0
    %v586 = vadd.f32 0.0, %v585
    %v587 = vpop.f32.mrb[0].mxu0
    %588 = vdwg.mxu0
    %v589 = vld [vmem:[#allocation5 + $0xe0] sm:$0x1]
    %v590 = vlaneseq
    %v591 = vshrl.u32 %v590, 7
    %v592 = vsub.s32 0, %v591
    %v593 = vrot.slane %v589, %v592
    %v594 = vmul.f32 %v583, %v593
    %v595 = vmul.f32 %v586, %v593
    %v596 = vadd.f32 %v468, %v594
    %v597 = vadd.f32 %v469, %v595
    %v598 = vld [vmem:[#allocation2 + $0x48] sm:$0xf]
    %v599 = vld [vmem:[#allocation2 + $0x4c] sm:$0xf]
    %v600 = vld [vmem:[#allocation2 + $0x50] sm:$0xf]
    %v601 = vld [vmem:[#allocation2 + $0x54] sm:$0xf]
    %v602 = vpack.c.bf16 %v597, %v596
    %v603 = vld [vmem:[#allocation5 + $0x20] sm:$0x1]
    %v604 = vlaneseq
    %v605 = vshrl.u32 %v604, 7
    %v606 = vsub.s32 0, %v605
    %v607 = vrot.slane %v603, %v606
    %v612 = vunpack.c.l.b16 %v598
    %v613 = vunpack.c.l.b16 %v599
    %v614 = vunpack.c.l.b16 %v600
    %v615 = vunpack.c.l.b16 %v601
    %v616 = vpack.c.b16 %v613, %v612
    %v617 = vpack.c.b16 %v615, %v614
    %v621 = vsel %vm169, %v602, 0
    %623 = vmatprep.subr.bf16.mxu0 0
    %624 = vmatpush1.bf16.msra.mxu0 %v616
    %625 = vmatprep.subr.bf16.mxu0 0
    %626 = vmatpush1.bf16.msra.mxu0 %v617
    %627 = vmatprep.subr.bf16.mxu0 0
    %628 = vmatpush1.bf16.msra.mxu0 0
    %629 = vmatprep.subr.bf16.mxu0 0
    %630 = vmatpush1.bf16.msra.mxu0 0
    %631 = vmatprep.subr.bf16.mxu0 0
    %632 = vmatpush1.bf16.msra.mxu0 0
    %633 = vmatprep.subr.bf16.mxu0 0
    %634 = vmatpush1.bf16.msra.mxu0 0
    %635 = vmatprep.subr.bf16.mxu0 0
    %636 = vmatpush1.bf16.msra.mxu0 0
    %637 = vmatprep.subr.bf16.mxu0 0
    %638 = vmatpush1.bf16.msra.mxu0 0
    %639 = vmatprep.subr.bf16.mxu0 0
    %640 = vmatpush1.bf16.msra.mxu0 0
    %641 = vmatprep.subr.bf16.mxu0 0
    %642 = vmatpush1.bf16.msra.mxu0 0
    %643 = vmatprep.subr.bf16.mxu0 0
    %644 = vmatpush1.bf16.msra.mxu0 0
    %645 = vmatprep.subr.bf16.mxu0 0
    %646 = vmatpush1.bf16.msra.mxu0 0
    %647 = vmatprep.subr.bf16.mxu0 0
    %648 = vmatpush1.bf16.msra.mxu0 0
    %649 = vmatprep.subr.bf16.mxu0 0
    %650 = vmatpush1.bf16.msra.mxu0 0
    %651 = vmatprep.subr.bf16.mxu0 0
    %652 = vmatpush1.bf16.msra.mxu0 0
    %653 = vmatprep.subr.bf16.mxu0 0
    %654 = vmatpush1.bf16.msra.mxu0 0
    %655 = vmatprep.mubr.bf16.mxu0 0
    %656 = vmatmul.mubr.bf16.gmra.mrb[0].mxu0 %v621
    %v657 = vpop.f32.mrb[0].mxu0
    %v658 = vadd.f32 %v607, %v657
    %v659 = vpop.f32.mrb[0].mxu0
    %v660 = vpop.f32.mrb[0].mxu0
    %v661 = vadd.f32 %v607, %v660
    %v662 = vpop.f32.mrb[0].mxu0
    %663 = vdwg.mxu0
    %v664 = vadd.f32 %v146, %v658
    %v665 = vadd.f32 %v146, %v661
    %v666 = vsel %vm169, %v664, 0.0
    %667 = vadd.xlane.f32.xlu0 %v666
    %v668 = vpop.xlane.xlu0 %667
    %v669 = vsel %vm169, %v665, 0.0
    %670 = vadd.xlane.f32.xlu0 %v669
    %v671 = vpop.xlane.xlu0 %670
    %v672 = vrcp.pop 32.0
    %v673 = vmul.f32 %v668, %v672
    %v674 = vmul.f32 %v671, %v672
    %v675 = vsub.f32 %v664, %v673
    %v676 = vsub.f32 %v665, %v674
    %v677 = vmul.f32 %v675, %v675
    %v678 = vmul.f32 %v676, %v676
    %v679 = vsel %vm169, %v677, 0.0
    %680 = vadd.xlane.f32.xlu0 %v679
    %v681 = vpop.xlane.xlu0 %680
    %v682 = vsel %vm169, %v678, 0.0
    %683 = vadd.xlane.f32.xlu0 %v682
    %v684 = vpop.xlane.xlu0 %683
    %v685 = vmul.f32 %v681, %v672
    %v686 = vmul.f32 %v684, %v672
    %v687 = vadd.f32 %v685, 1e-05
    %v688 = vadd.f32 %v686, 1e-05
    %v689 = vrsqrt.pop %v687
    %v690 = vrsqrt.pop %v688
    %v691 = vmul.f32 %v675, %v689
    %v692 = vmul.f32 %v676, %v690
    %v693 = vld [vmem:[#allocation5 + $0x48] sm:$0x1]
    %v694 = vlaneseq
    %v695 = vshrl.u32 %v694, 7
    %v696 = vsub.s32 0, %v695
    %v697 = vrot.slane %v693, %v696
    %v698 = vmul.f32 %v691, %v697
    %v699 = vmul.f32 %v692, %v697
    %v700 = vld [vmem:[#allocation5 + $0x50] sm:$0x1]
    %v701 = vlaneseq
    %v702 = vshrl.u32 %v701, 7
    %v703 = vsub.s32 0, %v702
    %v704 = vrot.slane %v700, %v703
    %v705 = vadd.f32 %v698, %v704
    %v706 = vadd.f32 %v699, %v704
    %v707 = vld [vmem:[#allocation2 + $0x68] sm:$0xf]
    %v708 = vld [vmem:[#allocation2 + $0x6c] sm:$0xf]
    %v709 = vld [vmem:[#allocation2 + $0x70] sm:$0xf]
    %v710 = vld [vmem:[#allocation2 + $0x74] sm:$0xf]
    %v711 = vld [vmem:[#allocation5 + $0x30] sm:$0x1]
    %v712 = vlaneseq
    %v713 = vshrl.u32 %v712, 7
    %v714 = vsub.s32 0, %v713
    %v715 = vrot.slane %v711, %v714
    %v718 = vunpack.c.l.b16 %v74
    %v719 = vunpack.c.l.b16 %v75
    %v720 = vpack.c.b16 %v719, %v718
    %v725 = vunpack.c.l.b16 %v707
    %v726 = vunpack.c.l.b16 %v708
    %v727 = vunpack.c.l.b16 %v709
    %v728 = vunpack.c.l.b16 %v710
    %v729 = vpack.c.b16 %v726, %v725
    %v730 = vpack.c.b16 %v728, %v727
    %v734 = vsel %vm169, %v720, 0
    %736 = vmatprep.subr.bf16.mxu0 0
    %737 = vmatpush1.bf16.msra.mxu0 %v729
    %738 = vmatprep.subr.bf16.mxu0 0
    %739 = vmatpush1.bf16.msra.mxu0 %v730
    %740 = vmatprep.subr.bf16.mxu0 0
    %741 = vmatpush1.bf16.msra.mxu0 0
    %742 = vmatprep.subr.bf16.mxu0 0
    %743 = vmatpush1.bf16.msra.mxu0 0
    %744 = vmatprep.subr.bf16.mxu0 0
    %745 = vmatpush1.bf16.msra.mxu0 0
    %746 = vmatprep.subr.bf16.mxu0 0
    %747 = vmatpush1.bf16.msra.mxu0 0
    %748 = vmatprep.subr.bf16.mxu0 0
    %749 = vmatpush1.bf16.msra.mxu0 0
    %750 = vmatprep.subr.bf16.mxu0 0
    %751 = vmatpush1.bf16.msra.mxu0 0
    %752 = vmatprep.subr.bf16.mxu0 0
    %753 = vmatpush1.bf16.msra.mxu0 0
    %754 = vmatprep.subr.bf16.mxu0 0
    %755 = vmatpush1.bf16.msra.mxu0 0
    %756 = vmatprep.subr.bf16.mxu0 0
    %757 = vmatpush1.bf16.msra.mxu0 0
    %758 = vmatprep.subr.bf16.mxu0 0
    %759 = vmatpush1.bf16.msra.mxu0 0
    %760 = vmatprep.subr.bf16.mxu0 0
    %761 = vmatpush1.bf16.msra.mxu0 0
    %762 = vmatprep.subr.bf16.mxu0 0
    %763 = vmatpush1.bf16.msra.mxu0 0
    %764 = vmatprep.subr.bf16.mxu0 0
    %765 = vmatpush1.bf16.msra.mxu0 0
    %766 = vmatprep.subr.bf16.mxu0 0
    %767 = vmatpush1.bf16.msra.mxu0 0
    %768 = vmatprep.mubr.bf16.mxu0 0
    %769 = vmatmul.mubr.bf16.gmra.mrb[0].mxu0 %v734
    %v770 = vpop.f32.mrb[0].mxu0
    %v771 = vadd.f32 %v715, %v770
    %v772 = vpop.f32.mrb[0].mxu0
    %v773 = vpop.f32.mrb[0].mxu0
    %v774 = vadd.f32 %v715, %v773
    %v775 = vpop.f32.mrb[0].mxu0
    %776 = vdwg.mxu0
    %v777 = vpack.c.bf16 %v774, %v771
    %v778 = vld [vmem:[#allocation2 + $0x78] sm:$0xf]
    %v779 = vld [vmem:[#allocation2 + $0x7c] sm:$0xf]
    %v780 = vld [vmem:[#allocation2 + $0x80] sm:$0xf]
    %v781 = vld [vmem:[#allocation2 + $0x84] sm:$0xf]
    %v782 = vld [vmem:[#allocation5 + $0x38] sm:$0x1]
    %v783 = vlaneseq
    %v784 = vshrl.u32 %v783, 7
    %v785 = vsub.s32 0, %v784
    %v786 = vrot.slane %v782, %v785
    %v791 = vunpack.c.l.b16 %v778
    %v792 = vunpack.c.l.b16 %v779
    %v793 = vunpack.c.l.b16 %v780
    %v794 = vunpack.c.l.b16 %v781
    %v795 = vpack.c.b16 %v792, %v791
    %v796 = vpack.c.b16 %v794, %v793
    %799 = vmatprep.subr.bf16.mxu0 0
    %800 = vmatpush1.bf16.msra.mxu0 %v795
    %801 = vmatprep.subr.bf16.mxu0 0
    %802 = vmatpush1.bf16.msra.mxu0 %v796
    %803 = vmatprep.subr.bf16.mxu0 0
    %804 = vmatpush1.bf16.msra.mxu0 0
    %805 = vmatprep.subr.bf16.mxu0 0
    %806 = vmatpush1.bf16.msra.mxu0 0
    %807 = vmatprep.subr.bf16.mxu0 0
    %808 = vmatpush1.bf16.msra.mxu0 0
    %809 = vmatprep.subr.bf16.mxu0 0
    %810 = vmatpush1.bf16.msra.mxu0 0
    %811 = vmatprep.subr.bf16.mxu0 0
    %812 = vmatpush1.bf16.msra.mxu0 0
    %813 = vmatprep.subr.bf16.mxu0 0
    %814 = vmatpush1.bf16.msra.mxu0 0
    %815 = vmatprep.subr.bf16.mxu0 0
    %816 = vmatpush1.bf16.msra.mxu0 0
    %817 = vmatprep.subr.bf16.mxu0 0
    %818 = vmatpush1.bf16.msra.mxu0 0
    %819 = vmatprep.subr.bf16.mxu0 0
    %820 = vmatpush1.bf16.msra.mxu0 0
    %821 = vmatprep.subr.bf16.mxu0 0
    %822 = vmatpush1.bf16.msra.mxu0 0
    %823 = vmatprep.subr.bf16.mxu0 0
    %824 = vmatpush1.bf16.msra.mxu0 0
    %825 = vmatprep.subr.bf16.mxu0 0
    %826 = vmatpush1.bf16.msra.mxu0 0
    %827 = vmatprep.subr.bf16.mxu0 0
    %828 = vmatpush1.bf16.msra.mxu0 0
    %829 = vmatprep.subr.bf16.mxu0 0
    %830 = vmatpush1.bf16.msra.mxu0 0
    %831 = vmatprep.mubr.bf16.mxu0 0
    %832 = vmatmul.mubr.bf16.gmra.mrb[0].mxu0 %v734
    %v833 = vpop.f32.mrb[0].mxu0
    %v834 = vadd.f32 %v786, %v833
    %v835 = vpop.f32.mrb[0].mxu0
    %v836 = vpop.f32.mrb[0].mxu0
    %v837 = vadd.f32 %v786, %v836
    %v838 = vpop.f32.mrb[0].mxu0
    %839 = vdwg.mxu0
    %v840 = vpack.c.bf16 %v837, %v834
    %v841 = vld [vmem:[#allocation2 + $0x58] sm:$0xf]
    %v842 = vld [vmem:[#allocation2 + $0x5c] sm:$0xf]
    %v843 = vld [vmem:[#allocation2 + $0x60] sm:$0xf]
    %v844 = vld [vmem:[#allocation2 + $0x64] sm:$0xf]
    %v845 = vpack.c.bf16 %v706, %v705
    %v846 = vld [vmem:[#allocation5 + $0x28] sm:$0x1]
    %v847 = vlaneseq
    %v848 = vshrl.u32 %v847, 7
    %v849 = vsub.s32 0, %v848
    %v850 = vrot.slane %v846, %v849
    %v855 = vunpack.c.l.b16 %v841
    %v856 = vunpack.c.l.b16 %v842
    %v857 = vunpack.c.l.b16 %v843
    %v858 = vunpack.c.l.b16 %v844
    %v859 = vpack.c.b16 %v856, %v855
    %v860 = vpack.c.b16 %v858, %v857
    %v864 = vsel %vm169, %v845, 0
    %866 = vmatprep.subr.bf16.mxu0 0
    %867 = vmatpush1.bf16.msra.mxu0 %v859
    %868 = vmatprep.subr.bf16.mxu0 0
    %869 = vmatpush1.bf16.msra.mxu0 %v860
    %870 = vmatprep.subr.bf16.mxu0 0
    %871 = vmatpush1.bf16.msra.mxu0 0
    %872 = vmatprep.subr.bf16.mxu0 0
    %873 = vmatpush1.bf16.msra.mxu0 0
    %874 = vmatprep.subr.bf16.mxu0 0
    %875 = vmatpush1.bf16.msra.mxu0 0
    %876 = vmatprep.subr.bf16.mxu0 0
    %877 = vmatpush1.bf16.msra.mxu0 0
    %878 = vmatprep.subr.bf16.mxu0 0
    %879 = vmatpush1.bf16.msra.mxu0 0
    %880 = vmatprep.subr.bf16.mxu0 0
    %881 = vmatpush1.bf16.msra.mxu0 0
    %882 = vmatprep.subr.bf16.mxu0 0
    %883 = vmatpush1.bf16.msra.mxu0 0
    %884 = vmatprep.subr.bf16.mxu0 0
    %885 = vmatpush1.bf16.msra.mxu0 0
    %886 = vmatprep.subr.bf16.mxu0 0
    %887 = vmatpush1.bf16.msra.mxu0 0
    %888 = vmatprep.subr.bf16.mxu0 0
    %889 = vmatpush1.bf16.msra.mxu0 0
    %890 = vmatprep.subr.bf16.mxu0 0
    %891 = vmatpush1.bf16.msra.mxu0 0
    %892 = vmatprep.subr.bf16.mxu0 0
    %893 = vmatpush1.bf16.msra.mxu0 0
    %894 = vmatprep.subr.bf16.mxu0 0
    %895 = vmatpush1.bf16.msra.mxu0 0
    %896 = vmatprep.subr.bf16.mxu0 0
    %897 = vmatpush1.bf16.msra.mxu0 0
    %898 = vmatprep.mubr.bf16.mxu0 0
    %899 = vmatmul.mubr.bf16.gmra.mrb[0].mxu0 %v864
    %v900 = vpop.f32.mrb[0].mxu0
    %v901 = vadd.f32 %v850, %v900
    %v902 = vpop.f32.mrb[0].mxu0
    %v903 = vpop.f32.mrb[0].mxu0
    %v904 = vadd.f32 %v850, %v903
    %v905 = vpop.f32.mrb[0].mxu0
    %906 = vdwg.mxu0
    %v907 = vmul.f32 %v901, %v344
    %v908 = vmul.f32 %v904, %v344
    %v909 = vpack.c.bf16 %v908, %v907
    %v911 = vsel %vm169, %v909, 0
    %v914 = vsel %vm169, %v777, 0
    %916 = vmatprep.subr.bf16.mxu0 0
    %917 = vmatpush1.bf16.xpose.msra.mxu0 %v914
    %918 = vmatprep.subr.bf16.mxu0 0
    %919 = vmatpush1.bf16.xpose.msra.mxu0 0
    %920 = vmatprep.subr.bf16.mxu0 0
    %921 = vmatpush1.bf16.xpose.msra.mxu0 0
    %922 = vmatprep.subr.bf16.mxu0 0
    %923 = vmatpush1.bf16.xpose.msra.mxu0 0
    %924 = vmatprep.subr.bf16.mxu0 0
    %925 = vmatpush1.bf16.xpose.msra.mxu0 0
    %926 = vmatprep.subr.bf16.mxu0 0
    %927 = vmatpush1.bf16.xpose.msra.mxu0 0
    %928 = vmatprep.subr.bf16.mxu0 0
    %929 = vmatpush1.bf16.xpose.msra.mxu0 0
    %930 = vmatprep.subr.bf16.mxu0 0
    %931 = vmatpush1.bf16.xpose.msra.mxu0 0
    %932 = vmatprep.subr.bf16.mxu0 0
    %933 = vmatpush1.bf16.xpose.msra.mxu0 0
    %934 = vmatprep.subr.bf16.mxu0 0
    %935 = vmatpush1.bf16.xpose.msra.mxu0 0
    %936 = vmatprep.subr.bf16.mxu0 0
    %937 = vmatpush1.bf16.xpose.msra.mxu0 0
    %938 = vmatprep.subr.bf16.mxu0 0
    %939 = vmatpush1.bf16.xpose.msra.mxu0 0
    %940 = vmatprep.subr.bf16.mxu0 0
    %941 = vmatpush1.bf16.xpose.msra.mxu0 0
    %942 = vmatprep.subr.bf16.mxu0 0
    %943 = vmatpush1.bf16.xpose.msra.mxu0 0
    %944 = vmatprep.subr.bf16.mxu0 0
    %945 = vmatpush1.bf16.xpose.msra.mxu0 0
    %946 = vmatprep.subr.bf16.mxu0 0
    %947 = vmatpush1.bf16.xpose.msra.mxu0 0
    %948 = vmatprep.mubr.bf16.mxu0 0
    %949 = vmatmul.mubr.bf16.gmra.mrb[0].mxu0 %v911
    %v950 = vpop.f32.mrb[0].mxu0
    %v951 = vadd.f32 %v76, %v950
    %v952 = vpop.f32.mrb[0].mxu0
    %v953 = vpop.f32.mrb[0].mxu0
    %v954 = vadd.f32 %v77, %v953
    %v955 = vpop.f32.mrb[0].mxu0
    %956 = vdwg.mxu0
    %v957 = vsel %vm395, %v951, -inf
    %958 = vmax.xlane.f32.xlu0 %v957
    %v959 = vpop.xlane.xlu0 %958
    %v960 = vsel %vm395, %v954, -inf
    %961 = vmax.xlane.f32.xlu0 %v960
    %v962 = vpop.xlane.xlu0 %961
    %v963 = vsub.f32 %v951, %v959
    %v964 = vsub.f32 %v954, %v962
    %v965 = vmul.f32 %v963, 1.442695
    %v966 = vpow.pop %v965
    %v967 = vmul.f32 %v964, 1.442695
    %v968 = vpow.pop %v967
    %v969 = vsel %vm395, %v966, 0.0
    %970 = vadd.xlane.f32.xlu0 %v969
    %v971 = vpop.xlane.xlu0 %970
    %v972 = vsel %vm395, %v968, 0.0
    %973 = vadd.xlane.f32.xlu0 %v972
    %v974 = vpop.xlane.xlu0 %973
    %v975 = vrcp.pop %v971
    %v976 = vrcp.pop %v974
    %v977 = vmul.f32 %v966, %v975
    %v978 = vmul.f32 %v968, %v976
    %v979 = vpack.c.bf16 %v978, %v977
    %v981 = vsel %vm395, %v979, 0
    %983 = vmatprep.subr.bf16.mxu0 0
    %984 = vmatpush1.bf16.msra.mxu0 %v840
    %985 = vmatprep.subr.bf16.mxu0 0
    %986 = vmatpush1.bf16.msra.mxu0 0
    %987 = vmatprep.subr.bf16.mxu0 0
    %988 = vmatpush1.bf16.msra.mxu0 0
    %989 = vmatprep.subr.bf16.mxu0 0
    %990 = vmatpush1.bf16.msra.mxu0 0
    %991 = vmatprep.subr.bf16.mxu0 0
    %992 = vmatpush1.bf16.msra.mxu0 0
    %993 = vmatprep.subr.bf16.mxu0 0
    %994 = vmatpush1.bf16.msra.mxu0 0
    %995 = vmatprep.subr.bf16.mxu0 0
    %996 = vmatpush1.bf16.msra.mxu0 0
    %997 = vmatprep.subr.bf16.mxu0 0
    %998 = vmatpush1.bf16.msra.mxu0 0
    %999 = vmatprep.subr.bf16.mxu0 0
    %1000 = vmatpush1.bf16.msra.mxu0 0
    %1001 = vmatprep.subr.bf16.mxu0 0
    %1002 = vmatpush1.bf16.msra.mxu0 0
    %1003 = vmatprep.subr.bf16.mxu0 0
    %1004 = vmatpush1.bf16.msra.mxu0 0
    %1005 = vmatprep.subr.bf16.mxu0 0
    %1006 = vmatpush1.bf16.msra.mxu0 0
    %1007 = vmatprep.subr.bf16.mxu0 0
    %1008 = vmatpush1.bf16.msra.mxu0 0
    %1009 = vmatprep.subr.bf16.mxu0 0
    %1010 = vmatpush1.bf16.msra.mxu0 0
    %1011 = vmatprep.subr.bf16.mxu0 0
    %1012 = vmatpush1.bf16.msra.mxu0 0
    %1013 = vmatprep.subr.bf16.mxu0 0
    %1014 = vmatpush1.bf16.msra.mxu0 0
    %1015 = vmatprep.mubr.bf16.mxu0 0
    %1016 = vmatmul.mubr.bf16.gmra.mrb[0].mxu0 %v981
    %v1017 = vpop.f32.mrb[0].mxu0
    %v1018 = vadd.f32 0.0, %v1017
    %v1019 = vpop.f32.mrb[0].mxu0
    %v1020 = vpop.f32.mrb[0].mxu0
    %v1021 = vadd.f32 0.0, %v1020
    %v1022 = vpop.f32.mrb[0].mxu0
    %1023 = vdwg.mxu0
    %v1024 = vmul.f32 %v1018, %v467
    %v1025 = vmul.f32 %v1021, %v467
    %v1026 = vmul.f32 %v901, %v474
    %v1027 = vmul.f32 %v904, %v474
    %v1028 = vpack.c.bf16 %v1027, %v1026
    %v1030 = vsel %vm169, %v1028, 0
    %1032 = vmatprep.subr.bf16.mxu0 0
    %1033 = vmatpush1.bf16.xpose.msra.mxu0 %v914
    %1034 = vmatprep.subr.bf16.mxu0 0
    %1035 = vmatpush1.bf16.xpose.msra.mxu0 0
    %1036 = vmatprep.subr.bf16.mxu0 0
    %1037 = vmatpush1.bf16.xpose.msra.mxu0 0
    %1038 = vmatprep.subr.bf16.mxu0 0
    %1039 = vmatpush1.bf16.xpose.msra.mxu0 0
    %1040 = vmatprep.subr.bf16.mxu0 0
    %1041 = vmatpush1.bf16.xpose.msra.mxu0 0
    %1042 = vmatprep.subr.bf16.mxu0 0
    %1043 = vmatpush1.bf16.xpose.msra.mxu0 0
    %1044 = vmatprep.subr.bf16.mxu0 0
    %1045 = vmatpush1.bf16.xpose.msra.mxu0 0
    %1046 = vmatprep.subr.bf16.mxu0 0
    %1047 = vmatpush1.bf16.xpose.msra.mxu0 0
    %1048 = vmatprep.subr.bf16.mxu0 0
    %1049 = vmatpush1.bf16.xpose.msra.mxu0 0
    %1050 = vmatprep.subr.bf16.mxu0 0
    %1051 = vmatpush1.bf16.xpose.msra.mxu0 0
    %1052 = vmatprep.subr.bf16.mxu0 0
    %1053 = vmatpush1.bf16.xpose.msra.mxu0 0
    %1054 = vmatprep.subr.bf16.mxu0 0
    %1055 = vmatpush1.bf16.xpose.msra.mxu0 0
    %1056 = vmatprep.subr.bf16.mxu0 0
    %1057 = vmatpush1.bf16.xpose.msra.mxu0 0
    %1058 = vmatprep.subr.bf16.mxu0 0
    %1059 = vmatpush1.bf16.xpose.msra.mxu0 0
    %1060 = vmatprep.subr.bf16.mxu0 0
    %1061 = vmatpush1.bf16.xpose.msra.mxu0 0
    %1062 = vmatprep.subr.bf16.mxu0 0
    %1063 = vmatpush1.bf16.xpose.msra.mxu0 0
    %1064 = vmatprep.mubr.bf16.mxu0 0
    %1065 = vmatmul.mubr.bf16.gmra.mrb[0].mxu0 %v1030
    %v1066 = vpop.f32.mrb[0].mxu0
    %v1067 = vadd.f32 %v76, %v1066
    %v1068 = vpop.f32.mrb[0].mxu0
    %v1069 = vpop.f32.mrb[0].mxu0
    %v1070 = vadd.f32 %v77, %v1069
    %v1071 = vpop.f32.mrb[0].mxu0
    %1072 = vdwg.mxu0
    %v1073 = vsel %vm395, %v1067, -inf
    %1074 = vmax.xlane.f32.xlu0 %v1073
    %v1075 = vpop.xlane.xlu0 %1074
    %v1076 = vsel %vm395, %v1070, -inf
    %1077 = vmax.xlane.f32.xlu0 %v1076
    %v1078 = vpop.xlane.xlu0 %1077
    %v1079 = vsub.f32 %v1067, %v1075
    %v1080 = vsub.f32 %v1070, %v1078
    %v1081 = vmul.f32 %v1079, 1.442695
    %v1082 = vpow.pop %v1081
    %v1083 = vmul.f32 %v1080, 1.442695
    %v1084 = vpow.pop %v1083
    %v1085 = vsel %vm395, %v1082, 0.0
    %1086 = vadd.xlane.f32.xlu0 %v1085
    %v1087 = vpop.xlane.xlu0 %1086
    %v1088 = vsel %vm395, %v1084, 0.0
    %1089 = vadd.xlane.f32.xlu0 %v1088
    %v1090 = vpop.xlane.xlu0 %1089
    %v1091 = vrcp.pop %v1087
    %v1092 = vrcp.pop %v1090
    %v1093 = vmul.f32 %v1082, %v1091
    %v1094 = vmul.f32 %v1084, %v1092
    %v1095 = vpack.c.bf16 %v1094, %v1093
    %v1097 = vsel %vm395, %v1095, 0
    %1099 = vmatprep.subr.bf16.mxu0 0
    %1100 = vmatpush1.bf16.msra.mxu0 %v840
    %1101 = vmatprep.subr.bf16.mxu0 0
    %1102 = vmatpush1.bf16.msra.mxu0 0
    %1103 = vmatprep.subr.bf16.mxu0 0
    %1104 = vmatpush1.bf16.msra.mxu0 0
    %1105 = vmatprep.subr.bf16.mxu0 0
    %1106 = vmatpush1.bf16.msra.mxu0 0
    %1107 = vmatprep.subr.bf16.mxu0 0
    %1108 = vmatpush1.bf16.msra.mxu0 0
    %1109 = vmatprep.subr.bf16.mxu0 0
    %1110 = vmatpush1.bf16.msra.mxu0 0
    %1111 = vmatprep.subr.bf16.mxu0 0
    %1112 = vmatpush1.bf16.msra.mxu0 0
    %1113 = vmatprep.subr.bf16.mxu0 0
    %1114 = vmatpush1.bf16.msra.mxu0 0
    %1115 = vmatprep.subr.bf16.mxu0 0
    %1116 = vmatpush1.bf16.msra.mxu0 0
    %1117 = vmatprep.subr.bf16.mxu0 0
    %1118 = vmatpush1.bf16.msra.mxu0 0
    %1119 = vmatprep.subr.bf16.mxu0 0
    %1120 = vmatpush1.bf16.msra.mxu0 0
    %1121 = vmatprep.subr.bf16.mxu0 0
    %1122 = vmatpush1.bf16.msra.mxu0 0
    %1123 = vmatprep.subr.bf16.mxu0 0
    %1124 = vmatpush1.bf16.msra.mxu0 0
    %1125 = vmatprep.subr.bf16.mxu0 0
    %1126 = vmatpush1.bf16.msra.mxu0 0
    %1127 = vmatprep.subr.bf16.mxu0 0
    %1128 = vmatpush1.bf16.msra.mxu0 0
    %1129 = vmatprep.subr.bf16.mxu0 0
    %1130 = vmatpush1.bf16.msra.mxu0 0
    %1131 = vmatprep.mubr.bf16.mxu0 0
    %1132 = vmatmul.mubr.bf16.gmra.mrb[0].mxu0 %v1097
    %v1133 = vpop.f32.mrb[0].mxu0
    %v1134 = vadd.f32 0.0, %v1133
    %v1135 = vpop.f32.mrb[0].mxu0
    %v1136 = vpop.f32.mrb[0].mxu0
    %v1137 = vadd.f32 0.0, %v1136
    %v1138 = vpop.f32.mrb[0].mxu0
    %1139 = vdwg.mxu0
    %v1140 = vmul.f32 %v1134, %v593
    %v1141 = vmul.f32 %v1137, %v593
    %v1142 = vadd.f32 %v1024, %v1140
    %v1143 = vadd.f32 %v1025, %v1141
    %v1144 = vld [vmem:[#allocation2 + $0x88] sm:$0xf]
    %v1145 = vld [vmem:[#allocation2 + $0x8c] sm:$0xf]
    %v1146 = vld [vmem:[#allocation2 + $0x90] sm:$0xf]
    %v1147 = vld [vmem:[#allocation2 + $0x94] sm:$0xf]
    %v1148 = vpack.c.bf16 %v1143, %v1142
    %v1149 = vld [vmem:[#allocation5 + $0x40] sm:$0x1]
    %v1150 = vlaneseq
    %v1151 = vshrl.u32 %v1150, 7
    %v1152 = vsub.s32 0, %v1151
    %v1153 = vrot.slane %v1149, %v1152
    %v1158 = vunpack.c.l.b16 %v1144
    %v1159 = vunpack.c.l.b16 %v1145
    %v1160 = vunpack.c.l.b16 %v1146
    %v1161 = vunpack.c.l.b16 %v1147
    %v1162 = vpack.c.b16 %v1159, %v1158
    %v1163 = vpack.c.b16 %v1161, %v1160
    %v1167 = vsel %vm169, %v1148, 0
    %1169 = vmatprep.subr.bf16.mxu0 0
    %1170 = vmatpush1.bf16.msra.mxu0 %v1162
    %1171 = vmatprep.subr.bf16.mxu0 0
    %1172 = vmatpush1.bf16.msra.mxu0 %v1163
    %1173 = vmatprep.subr.bf16.mxu0 0
    %1174 = vmatpush1.bf16.msra.mxu0 0
    %1175 = vmatprep.subr.bf16.mxu0 0
    %1176 = vmatpush1.bf16.msra.mxu0 0
    %1177 = vmatprep.subr.bf16.mxu0 0
    %1178 = vmatpush1.bf16.msra.mxu0 0
    %1179 = vmatprep.subr.bf16.mxu0 0
    %1180 = vmatpush1.bf16.msra.mxu0 0
    %1181 = vmatprep.subr.bf16.mxu0 0
    %1182 = vmatpush1.bf16.msra.mxu0 0
    %1183 = vmatprep.subr.bf16.mxu0 0
    %1184 = vmatpush1.bf16.msra.mxu0 0
    %1185 = vmatprep.subr.bf16.mxu0 0
    %1186 = vmatpush1.bf16.msra.mxu0 0
    %1187 = vmatprep.subr.bf16.mxu0 0
    %1188 = vmatpush1.bf16.msra.mxu0 0
    %1189 = vmatprep.subr.bf16.mxu0 0
    %1190 = vmatpush1.bf16.msra.mxu0 0
    %1191 = vmatprep.subr.bf16.mxu0 0
    %1192 = vmatpush1.bf16.msra.mxu0 0
    %1193 = vmatprep.subr.bf16.mxu0 0
    %1194 = vmatpush1.bf16.msra.mxu0 0
    %1195 = vmatprep.subr.bf16.mxu0 0
    %1196 = vmatpush1.bf16.msra.mxu0 0
    %1197 = vmatprep.subr.bf16.mxu0 0
    %1198 = vmatpush1.bf16.msra.mxu0 0
    %1199 = vmatprep.subr.bf16.mxu0 0
    %1200 = vmatpush1.bf16.msra.mxu0 0
    %1201 = vmatprep.mubr.bf16.mxu0 0
    %1202 = vmatmul.mubr.bf16.gmra.mrb[0].mxu0 %v1167
    %v1203 = vpop.f32.mrb[0].mxu0
    %v1204 = vadd.f32 %v1153, %v1203
    %v1205 = vpop.f32.mrb[0].mxu0
    %v1206 = vpop.f32.mrb[0].mxu0
    %v1207 = vadd.f32 %v1153, %v1206
    %v1208 = vpop.f32.mrb[0].mxu0
    %1209 = vdwg.mxu0
    %v1210 = vadd.f32 %v705, %v1204
    %v1211 = vadd.f32 %v706, %v1207
    %v1212 = vsel %vm169, %v1210, 0.0
    %1213 = vadd.xlane.f32.xlu0 %v1212
    %v1214 = vpop.xlane.xlu0 %1213
    %v1215 = vsel %vm169, %v1211, 0.0
    %1216 = vadd.xlane.f32.xlu0 %v1215
    %v1217 = vpop.xlane.xlu0 %1216
    %v1218 = vmul.f32 %v1214, %v672
    %v1219 = vmul.f32 %v1217, %v672
    %v1220 = vsub.f32 %v1210, %v1218
    %v1221 = vsub.f32 %v1211, %v1219
    %v1222 = vmul.f32 %v1220, %v1220
    %v1223 = vmul.f32 %v1221, %v1221
    %v1224 = vsel %vm169, %v1222, 0.0
    %1225 = vadd.xlane.f32.xlu0 %v1224
    %v1226 = vpop.xlane.xlu0 %1225
    %v1227 = vsel %vm169, %v1223, 0.0
    %1228 = vadd.xlane.f32.xlu0 %v1227
    %v1229 = vpop.xlane.xlu0 %1228
    %v1230 = vmul.f32 %v1226, %v672
    %v1231 = vmul.f32 %v1229, %v672
    %v1232 = vadd.f32 %v1230, 1e-05
    %v1233 = vadd.f32 %v1231, 1e-05
    %v1234 = vrsqrt.pop %v1232
    %v1235 = vrsqrt.pop %v1233
    %v1236 = vmul.f32 %v1220, %v1234
    %v1237 = vmul.f32 %v1221, %v1235
    %v1238 = vld [vmem:[#allocation5 + $0x58] sm:$0x1]
    %v1239 = vlaneseq
    %v1240 = vshrl.u32 %v1239, 7
    %v1241 = vsub.s32 0, %v1240
    %v1242 = vrot.slane %v1238, %v1241
    %v1243 = vmul.f32 %v1236, %v1242
    %v1244 = vmul.f32 %v1237, %v1242
    %v1245 = vld [vmem:[#allocation5 + $0x60] sm:$0x1]
    %v1246 = vlaneseq
    %v1247 = vshrl.u32 %v1246, 7
    %v1248 = vsub.s32 0, %v1247
    %v1249 = vrot.slane %v1245, %v1248
    %v1250 = vadd.f32 %v1243, %v1249
    %v1251 = vadd.f32 %v1244, %v1249
    %v1252 = vld [vmem:[#allocation2 + $0x98] sm:$0xf]
    %v1253 = vld [vmem:[#allocation2 + $0x9c] sm:$0xf]
    %v1254 = vld [vmem:[#allocation2 + $0xa0] sm:$0xf]
    %v1255 = vld [vmem:[#allocation2 + $0xa4] sm:$0xf]
    %v1256 = vpack.c.bf16 %v1251, %v1250
    %v1257 = vld [vmem:[#allocation5 + $0x78] sm:$0x1]
    %v1258 = vlaneseq
    %v1259 = vshrl.u32 %v1258, 7
    %v1260 = vsub.s32 0, %v1259
    %v1261 = vrot.slane %v1257, %v1260
    %v1266 = vunpack.c.l.b16 %v1252
    %v1267 = vunpack.c.l.b16 %v1253
    %v1268 = vunpack.c.l.b16 %v1254
    %v1269 = vunpack.c.l.b16 %v1255
    %v1270 = vpack.c.b16 %v1267, %v1266
    %v1271 = vpack.c.b16 %v1269, %v1268
    %v1275 = vsel %vm169, %v1256, 0
    %1277 = vmatprep.subr.bf16.mxu0 0
    %1278 = vmatpush1.bf16.msra.mxu0 %v1270
    %1279 = vmatprep.subr.bf16.mxu0 0
    %1280 = vmatpush1.bf16.msra.mxu0 %v1271
    %1281 = vmatprep.subr.bf16.mxu0 0
    %1282 = vmatpush1.bf16.msra.mxu0 0
    %1283 = vmatprep.subr.bf16.mxu0 0
    %1284 = vmatpush1.bf16.msra.mxu0 0
    %1285 = vmatprep.subr.bf16.mxu0 0
    %1286 = vmatpush1.bf16.msra.mxu0 0
    %1287 = vmatprep.subr.bf16.mxu0 0
    %1288 = vmatpush1.bf16.msra.mxu0 0
    %1289 = vmatprep.subr.bf16.mxu0 0
    %1290 = vmatpush1.bf16.msra.mxu0 0
    %1291 = vmatprep.subr.bf16.mxu0 0
    %1292 = vmatpush1.bf16.msra.mxu0 0
    %1293 = vmatprep.subr.bf16.mxu0 0
    %1294 = vmatpush1.bf16.msra.mxu0 0
    %1295 = vmatprep.subr.bf16.mxu0 0
    %1296 = vmatpush1.bf16.msra.mxu0 0
    %1297 = vmatprep.subr.bf16.mxu0 0
    %1298 = vmatpush1.bf16.msra.mxu0 0
    %1299 = vmatprep.subr.bf16.mxu0 0
    %1300 = vmatpush1.bf16.msra.mxu0 0
    %1301 = vmatprep.subr.bf16.mxu0 0
    %1302 = vmatpush1.bf16.msra.mxu0 0
    %1303 = vmatprep.subr.bf16.mxu0 0
    %1304 = vmatpush1.bf16.msra.mxu0 0
    %1305 = vmatprep.subr.bf16.mxu0 0
    %1306 = vmatpush1.bf16.msra.mxu0 0
    %1307 = vmatprep.subr.bf16.mxu0 0
    %1308 = vmatpush1.bf16.msra.mxu0 0
    %1309 = vmatprep.mubr.bf16.mxu0 0
    %1310 = vmatmul.mubr.bf16.gmra.mrb[0].mxu0 %v1275
    %v1311 = vpop.f32.mrb[0].mxu0
    %v1312 = vadd.f32 %v1261, %v1311
    %v1313 = vpop.f32.mrb[0].mxu0
    %v1314 = vpop.f32.mrb[0].mxu0
    %v1315 = vadd.f32 %v1261, %v1314
    %v1316 = vpop.f32.mrb[0].mxu0
    %1317 = vdwg.mxu0
    %v1318 = vmax.f32 %v1312, 0.0
    %v1319 = vmax.f32 %v1315, 0.0
    %v1320 = vld [vmem:[#allocation2 + $0xa8] sm:$0xf]
    %v1321 = vld [vmem:[#allocation2 + $0xac] sm:$0xf]
    %v1322 = vld [vmem:[#allocation2 + $0xb0] sm:$0xf]
    %v1323 = vld [vmem:[#allocation2 + $0xb4] sm:$0xf]
    %v1324 = vld [vmem:[#allocation2 + $0xb8] sm:$0xf]
    %v1325 = vld [vmem:[#allocation2 + $0xbc] sm:$0xf]
    %v1326 = vld [vmem:[#allocation2 + $0xc0] sm:$0xf]
    %v1327 = vld [vmem:[#allocation2 + $0xc4] sm:$0xf]
    %v1328 = vpack.c.bf16 %v1319, %v1318
    %v1329 = vld [vmem:[#allocation5 + $0x80] sm:$0x1]
    %v1330 = vlaneseq
    %v1331 = vshrl.u32 %v1330, 7
    %v1332 = vsub.s32 0, %v1331
    %v1333 = vrot.slane %v1329, %v1332
    %v1342 = vunpack.c.l.b16 %v1320
    %v1343 = vunpack.c.l.b16 %v1321
    %v1344 = vunpack.c.l.b16 %v1322
    %v1345 = vunpack.c.l.b16 %v1323
    %v1346 = vunpack.c.l.b16 %v1324
    %v1347 = vunpack.c.l.b16 %v1325
    %v1348 = vunpack.c.l.b16 %v1326
    %v1349 = vunpack.c.l.b16 %v1327
    %v1350 = vpack.c.b16 %v1343, %v1342
    %v1351 = vpack.c.b16 %v1345, %v1344
    %v1352 = vpack.c.b16 %v1347, %v1346
    %v1353 = vpack.c.b16 %v1349, %v1348
    %vm1358 = vcmask 523264
    %v1360 = vsel %vm1358, %v1328, 0
    %1362 = vmatprep.subr.bf16.mxu0 0
    %1363 = vmatpush1.bf16.msra.mxu0 %v1350
    %1364 = vmatprep.subr.bf16.mxu0 0
    %1365 = vmatpush1.bf16.msra.mxu0 %v1351
    %1366 = vmatprep.subr.bf16.mxu0 0
    %1367 = vmatpush1.bf16.msra.mxu0 %v1352
    %1368 = vmatprep.subr.bf16.mxu0 0
    %1369 = vmatpush1.bf16.msra.mxu0 %v1353
    %1370 = vmatprep.subr.bf16.mxu0 0
    %1371 = vmatpush1.bf16.msra.mxu0 0
    %1372 = vmatprep.subr.bf16.mxu0 0
    %1373 = vmatpush1.bf16.msra.mxu0 0
    %1374 = vmatprep.subr.bf16.mxu0 0
    %1375 = vmatpush1.bf16.msra.mxu0 0
    %1376 = vmatprep.subr.bf16.mxu0 0
    %1377 = vmatpush1.bf16.msra.mxu0 0
    %1378 = vmatprep.subr.bf16.mxu0 0
    %1379 = vmatpush1.bf16.msra.mxu0 0
    %1380 = vmatprep.subr.bf16.mxu0 0
    %1381 = vmatpush1.bf16.msra.mxu0 0
    %1382 = vmatprep.subr.bf16.mxu0 0
    %1383 = vmatpush1.bf16.msra.mxu0 0
    %1384 = vmatprep.subr.bf16.mxu0 0
    %1385 = vmatpush1.bf16.msra.mxu0 0
    %1386 = vmatprep.subr.bf16.mxu0 0
    %1387 = vmatpush1.bf16.msra.mxu0 0
    %1388 = vmatprep.subr.bf16.mxu0 0
    %1389 = vmatpush1.bf16.msra.mxu0 0
    %1390 = vmatprep.subr.bf16.mxu0 0
    %1391 = vmatpush1.bf16.msra.mxu0 0
    %1392 = vmatprep.subr.bf16.mxu0 0
    %1393 = vmatpush1.bf16.msra.mxu0 0
    %1394 = vmatprep.mubr.bf16.mxu0 0
    %1395 = vmatmul.mubr.bf16.gmra.mrb[0].mxu0 %v1360
    %v1396 = vpop.f32.mrb[0].mxu0
    %v1397 = vadd.f32 %v1333, %v1396
    %v1398 = vpop.f32.mrb[0].mxu0
    %v1399 = vpop.f32.mrb[0].mxu0
    %v1400 = vadd.f32 %v1333, %v1399
    %v1401 = vpop.f32.mrb[0].mxu0
    %1402 = vdwg.mxu0
    %v1403 = vadd.f32 %v1250, %v1397
    %v1404 = vadd.f32 %v1251, %v1400
    %v1405 = vsel %vm169, %v1403, 0.0
    %1406 = vadd.xlane.f32.xlu0 %v1405
    %v1407 = vpop.xlane.xlu0 %1406
    %v1408 = vsel %vm169, %v1404, 0.0
    %1409 = vadd.xlane.f32.xlu0 %v1408
    %v1410 = vpop.xlane.xlu0 %1409
    %v1411 = vmul.f32 %v1407, %v672
    %v1412 = vmul.f32 %v1410, %v672
    %v1413 = vsub.f32 %v1403, %v1411
    %v1414 = vsub.f32 %v1404, %v1412
    %v1415 = vmul.f32 %v1413, %v1413
    %v1416 = vmul.f32 %v1414, %v1414
    %v1417 = vsel %vm169, %v1415, 0.0
    %1418 = vadd.xlane.f32.xlu0 %v1417
    %v1419 = vpop.xlane.xlu0 %1418
    %v1420 = vsel %vm169, %v1416, 0.0
    %1421 = vadd.xlane.f32.xlu0 %v1420
    %v1422 = vpop.xlane.xlu0 %1421
    %v1423 = vmul.f32 %v1419, %v672
    %v1424 = vmul.f32 %v1422, %v672
    %v1425 = vadd.f32 %v1423, 1e-05
    %v1426 = vadd.f32 %v1424, 1e-05
    %v1427 = vrsqrt.pop %v1425
    %v1428 = vrsqrt.pop %v1426
    %v1429 = vmul.f32 %v1413, %v1427
    %v1430 = vmul.f32 %v1414, %v1428
    %v1431 = vld [vmem:[#allocation5 + $0x68] sm:$0x1]
    %v1432 = vlaneseq
    %v1433 = vshrl.u32 %v1432, 7
    %v1434 = vsub.s32 0, %v1433
    %v1435 = vrot.slane %v1431, %v1434
    %v1436 = vmul.f32 %v1429, %v1435
    %v1437 = vmul.f32 %v1430, %v1435
    %v1438 = vld [vmem:[#allocation5 + $0x70] sm:$0x1]
    %v1439 = vlaneseq
    %v1440 = vshrl.u32 %v1439, 7
    %v1441 = vsub.s32 0, %v1440
    %v1442 = vrot.slane %v1438, %v1441
    %v1443 = vadd.f32 %v1436, %v1442
    %v1444 = vadd.f32 %v1437, %v1442
    %v1445 = vld [vmem:[#allocation2 + $0xc8] sm:$0xf]
    %v1446 = vld [vmem:[#allocation2 + $0xcc] sm:$0xf]
    %v1447 = vld [vmem:[#allocation2 + $0xd0] sm:$0xf]
    %v1448 = vld [vmem:[#allocation2 + $0xd4] sm:$0xf]
    %v1449 = vpack.c.bf16 %v1444, %v1443
    %v1450 = vld [vmem:[#allocation5 + $0x88] sm:$0x1]
    %v1451 = vlaneseq
    %v1452 = vshrl.u32 %v1451, 7
    %v1453 = vsub.s32 0, %v1452
    %v1454 = vrot.slane %v1450, %v1453
    %v1459 = vunpack.c.l.b16 %v1445
    %v1460 = vunpack.c.l.b16 %v1446
    %v1461 = vunpack.c.l.b16 %v1447
    %v1462 = vunpack.c.l.b16 %v1448
    %v1463 = vpack.c.b16 %v1460, %v1459
    %v1464 = vpack.c.b16 %v1462, %v1461
    %v1468 = vsel %vm169, %v1449, 0
    %1470 = vmatprep.subr.bf16.mxu0 0
    %1471 = vmatpush1.bf16.msra.mxu0 %v1463
    %1472 = vmatprep.subr.bf16.mxu0 0
    %1473 = vmatpush1.bf16.msra.mxu0 %v1464
    %1474 = vmatprep.subr.bf16.mxu0 0
    %1475 = vmatpush1.bf16.msra.mxu0 0
    %1476 = vmatprep.subr.bf16.mxu0 0
    %1477 = vmatpush1.bf16.msra.mxu0 0
    %1478 = vmatprep.subr.bf16.mxu0 0
    %1479 = vmatpush1.bf16.msra.mxu0 0
    %1480 = vmatprep.subr.bf16.mxu0 0
    %1481 = vmatpush1.bf16.msra.mxu0 0
    %1482 = vmatprep.subr.bf16.mxu0 0
    %1483 = vmatpush1.bf16.msra.mxu0 0
    %1484 = vmatprep.subr.bf16.mxu0 0
    %1485 = vmatpush1.bf16.msra.mxu0 0
    %1486 = vmatprep.subr.bf16.mxu0 0
    %1487 = vmatpush1.bf16.msra.mxu0 0
    %1488 = vmatprep.subr.bf16.mxu0 0
    %1489 = vmatpush1.bf16.msra.mxu0 0
    %1490 = vmatprep.subr.bf16.mxu0 0
    %1491 = vmatpush1.bf16.msra.mxu0 0
    %1492 = vmatprep.subr.bf16.mxu0 0
    %1493 = vmatpush1.bf16.msra.mxu0 0
    %1494 = vmatprep.subr.bf16.mxu0 0
    %1495 = vmatpush1.bf16.msra.mxu0 0
    %1496 = vmatprep.subr.bf16.mxu0 0
    %1497 = vmatpush1.bf16.msra.mxu0 0
    %1498 = vmatprep.subr.bf16.mxu0 0
    %1499 = vmatpush1.bf16.msra.mxu0 0
    %1500 = vmatprep.subr.bf16.mxu0 0
    %1501 = vmatpush1.bf16.msra.mxu0 0
    %1502 = vmatprep.mubr.bf16.mxu0 0
    %1503 = vmatmul.mubr.bf16.gmra.mrb[0].mxu0 %v1468
    %v1504 = vpop.f32.mrb[0].mxu0
    %v1505 = vadd.f32 %v1454, %v1504
    %v1506 = vpop.f32.mrb[0].mxu0
    %v1507 = vpop.f32.mrb[0].mxu0
    %v1508 = vadd.f32 %v1454, %v1507
    %v1509 = vpop.f32.mrb[0].mxu0
    %1510 = vdwg.mxu0
    %v1511 = vld [vmem:[#allocation2 + $0xd8] sm:$0xf]
    %v1512 = vld [vmem:[#allocation2 + $0xdc] sm:$0xf]
    %v1513 = vld [vmem:[#allocation2 + $0xe0] sm:$0xf]
    %v1514 = vld [vmem:[#allocation2 + $0xe4] sm:$0xf]
    %v1515 = vpack.c.bf16 %v1508, %v1505
    %v1516 = vld [vmem:[#allocation5 + $0x90] sm:$0x1]
    %v1517 = vlaneseq
    %v1518 = vshrl.u32 %v1517, 7
    %v1519 = vsub.s32 0, %v1518
    %v1520 = vrot.slane %v1516, %v1519
    %v1525 = vunpack.c.l.b16 %v1511
    %v1526 = vunpack.c.l.b16 %v1512
    %v1527 = vunpack.c.l.b16 %v1513
    %v1528 = vunpack.c.l.b16 %v1514
    %v1529 = vpack.c.b16 %v1526, %v1525
    %v1530 = vpack.c.b16 %v1528, %v1527
    %v1534 = vsel %vm169, %v1515, 0
    %1536 = vmatprep.subr.bf16.mxu0 0
    %1537 = vmatpush1.bf16.msra.mxu0 %v1529
    %1538 = vmatprep.subr.bf16.mxu0 0
    %1539 = vmatpush1.bf16.msra.mxu0 %v1530
    %1540 = vmatprep.subr.bf16.mxu0 0
    %1541 = vmatpush1.bf16.msra.mxu0 0
    %1542 = vmatprep.subr.bf16.mxu0 0
    %1543 = vmatpush1.bf16.msra.mxu0 0
    %1544 = vmatprep.subr.bf16.mxu0 0
    %1545 = vmatpush1.bf16.msra.mxu0 0
    %1546 = vmatprep.subr.bf16.mxu0 0
    %1547 = vmatpush1.bf16.msra.mxu0 0
    %1548 = vmatprep.subr.bf16.mxu0 0
    %1549 = vmatpush1.bf16.msra.mxu0 0
    %1550 = vmatprep.subr.bf16.mxu0 0
    %1551 = vmatpush1.bf16.msra.mxu0 0
    %1552 = vmatprep.subr.bf16.mxu0 0
    %1553 = vmatpush1.bf16.msra.mxu0 0
    %1554 = vmatprep.subr.bf16.mxu0 0
    %1555 = vmatpush1.bf16.msra.mxu0 0
    %1556 = vmatprep.subr.bf16.mxu0 0
    %1557 = vmatpush1.bf16.msra.mxu0 0
    %1558 = vmatprep.subr.bf16.mxu0 0
    %1559 = vmatpush1.bf16.msra.mxu0 0
    %1560 = vmatprep.subr.bf16.mxu0 0
    %1561 = vmatpush1.bf16.msra.mxu0 0
    %1562 = vmatprep.subr.bf16.mxu0 0
    %1563 = vmatpush1.bf16.msra.mxu0 0
    %1564 = vmatprep.subr.bf16.mxu0 0
    %1565 = vmatpush1.bf16.msra.mxu0 0
    %1566 = vmatprep.subr.bf16.mxu0 0
    %1567 = vmatpush1.bf16.msra.mxu0 0
    %1568 = vmatprep.mubr.bf16.mxu0 0
    %1569 = vmatmul.mubr.bf16.gmra.mrb[0].mxu0 %v1534
    %v1570 = vpop.f32.mrb[0].mxu0
    %v1571 = vadd.f32 %v1520, %v1570
    %v1572 = vpop.f32.mrb[0].mxu0
    %v1573 = vpop.f32.mrb[0].mxu0
    %v1574 = vadd.f32 %v1520, %v1573
    %v1575 = vpop.f32.mrb[0].mxu0
    %1576 = vdwg.mxu0
    %v1577 = vmax.f32 %v1571, 0.0
    %v1578 = vmax.f32 %v1574, 0.0
    %v1579 = vld [vmem:[#allocation2 + $0xe8] sm:$0xf]
    %v1580 = vld [vmem:[#allocation2 + $0xec] sm:$0xf]
    %v1581 = vld [vmem:[#allocation2 + $0xf0] sm:$0xf]
    %v1582 = vld [vmem:[#allocation2 + $0xf4] sm:$0xf]
    %v1583 = vpack.c.bf16 %v1578, %v1577
    %v1584 = vld [vmem:[#allocation5 + $0x98] sm:$0x1]
    %v1585 = vlaneseq
    %v1586 = vshrl.u32 %v1585, 7
    %v1587 = vsub.s32 0, %v1586
    %v1588 = vrot.slane %v1584, %v1587
    %v1593 = vunpack.c.l.b16 %v1579
    %v1594 = vunpack.c.l.b16 %v1580
    %v1595 = vunpack.c.l.b16 %v1581
    %v1596 = vunpack.c.l.b16 %v1582
    %v1597 = vpack.c.b16 %v1594, %v1593
    %v1598 = vpack.c.b16 %v1596, %v1595
    %v1602 = vsel %vm169, %v1583, 0
    %1604 = vmatprep.subr.bf16.mxu0 0
    %1605 = vmatpush1.bf16.msra.mxu0 %v1597
    %1606 = vmatprep.subr.bf16.mxu0 0
    %1607 = vmatpush1.bf16.msra.mxu0 %v1598
    %1608 = vmatprep.subr.bf16.mxu0 0
    %1609 = vmatpush1.bf16.msra.mxu0 0
    %1610 = vmatprep.subr.bf16.mxu0 0
    %1611 = vmatpush1.bf16.msra.mxu0 0
    %1612 = vmatprep.subr.bf16.mxu0 0
    %1613 = vmatpush1.bf16.msra.mxu0 0
    %1614 = vmatprep.subr.bf16.mxu0 0
    %1615 = vmatpush1.bf16.msra.mxu0 0
    %1616 = vmatprep.subr.bf16.mxu0 0
    %1617 = vmatpush1.bf16.msra.mxu0 0
    %1618 = vmatprep.subr.bf16.mxu0 0
    %1619 = vmatpush1.bf16.msra.mxu0 0
    %1620 = vmatprep.subr.bf16.mxu0 0
    %1621 = vmatpush1.bf16.msra.mxu0 0
    %1622 = vmatprep.subr.bf16.mxu0 0
    %1623 = vmatpush1.bf16.msra.mxu0 0
    %1624 = vmatprep.subr.bf16.mxu0 0
    %1625 = vmatpush1.bf16.msra.mxu0 0
    %1626 = vmatprep.subr.bf16.mxu0 0
    %1627 = vmatpush1.bf16.msra.mxu0 0
    %1628 = vmatprep.subr.bf16.mxu0 0
    %1629 = vmatpush1.bf16.msra.mxu0 0
    %1630 = vmatprep.subr.bf16.mxu0 0
    %1631 = vmatpush1.bf16.msra.mxu0 0
    %1632 = vmatprep.subr.bf16.mxu0 0
    %1633 = vmatpush1.bf16.msra.mxu0 0
    %1634 = vmatprep.subr.bf16.mxu0 0
    %1635 = vmatpush1.bf16.msra.mxu0 0
    %1636 = vmatprep.mubr.bf16.mxu0 0
    %1637 = vmatmul.mubr.bf16.gmra.mrb[0].mxu0 %v1602
    %v1638 = vpop.f32.mrb[0].mxu0
    %v1639 = vadd.f32 %v1588, %v1638
    %v1640 = vpop.f32.mrb[0].mxu0
    %v1641 = vpop.f32.mrb[0].mxu0
    %v1642 = vadd.f32 %v1588, %v1641
    %v1643 = vpop.f32.mrb[0].mxu0
    %1644 = vdwg.mxu0
    %v1645 = vld [vmem:[#allocation5 + $0xb0] sm:$0xff]
    %v1646 = vld [vmem:[#allocation5 + $0xb8] sm:$0x1]
    %vm1647 = vcmp.gt.f32.partialorder %v1646, 0.5
    %v1648 = vld [vmem:[#allocation5 + $0xc0] sm:$0x1]
    %vm1649 = vcmp.gt.f32.partialorder %v1648, 0.5
    %v1650 = vadd.f32 %v1639, %v1645
    %v1651 = vadd.f32 %v1642, %v1645
    %v1652 = vmul.f32 %v1639, 1.442695
    %v1653 = vpow.pop %v1652
    %v1654 = vmul.f32 %v1642, 1.442695
    %v1655 = vpow.pop %v1654
    %v1656 = vtanh.pop %v1639
    %v1657 = vtanh.pop %v1642
    %v1658 = vsel %vm1649, 1, 0
    %v1659 = vlaneseq
    %v1660 = vshrl.u32 %v1659, 7
    %v1661 = vsub.s32 0, %v1660
    %v1662 = vrot.slane %v1658, %v1661
    %vm1663 = vcmp.eq.s32.totalorder %v1662, 1
    %v1664 = vsel %vm1663, %v1653, %v1656
    %v1665 = vsel %vm1663, %v1655, %v1657
    %v1666 = vsel %vm1647, 1, 0
    %v1667 = vlaneseq
    %v1668 = vshrl.u32 %v1667, 7
    %v1669 = vsub.s32 0, %v1668
    %v1670 = vrot.slane %v1666, %v1669
    %vm1671 = vcmp.eq.s32.totalorder %v1670, 1
    %v1672 = vsel %vm1671, %v1650, %v1664
    %v1673 = vsel %vm1671, %v1651, %v1665
    %v1674 = vld [vmem:[#allocation2 + $0xf8] sm:$0xf]
    %v1675 = vld [vmem:[#allocation2 + $0xfc] sm:$0xf]
    %v1676 = vld [vmem:[#allocation2 + $0x100] sm:$0xf]
    %v1677 = vld [vmem:[#allocation2 + $0x104] sm:$0xf]
    %v1678 = vld [vmem:[#allocation5 + $0xa0] sm:$0x1]
    %v1679 = vlaneseq
    %v1680 = vshrl.u32 %v1679, 7
    %v1681 = vsub.s32 0, %v1680
    %v1682 = vrot.slane %v1678, %v1681
    %v1687 = vunpack.c.l.b16 %v1674
    %v1688 = vunpack.c.l.b16 %v1675
    %v1689 = vunpack.c.l.b16 %v1676
    %v1690 = vunpack.c.l.b16 %v1677
    %v1691 = vpack.c.b16 %v1688, %v1687
    %v1692 = vpack.c.b16 %v1690, %v1689
    %1695 = vmatprep.subr.bf16.mxu0 0
    %1696 = vmatpush1.bf16.msra.mxu0 %v1691
    %1697 = vmatprep.subr.bf16.mxu0 0
    %1698 = vmatpush1.bf16.msra.mxu0 %v1692
    %1699 = vmatprep.subr.bf16.mxu0 0
    %1700 = vmatpush1.bf16.msra.mxu0 0
    %1701 = vmatprep.subr.bf16.mxu0 0
    %1702 = vmatpush1.bf16.msra.mxu0 0
    %1703 = vmatprep.subr.bf16.mxu0 0
    %1704 = vmatpush1.bf16.msra.mxu0 0
    %1705 = vmatprep.subr.bf16.mxu0 0
    %1706 = vmatpush1.bf16.msra.mxu0 0
    %1707 = vmatprep.subr.bf16.mxu0 0
    %1708 = vmatpush1.bf16.msra.mxu0 0
    %1709 = vmatprep.subr.bf16.mxu0 0
    %1710 = vmatpush1.bf16.msra.mxu0 0
    %1711 = vmatprep.subr.bf16.mxu0 0
    %1712 = vmatpush1.bf16.msra.mxu0 0
    %1713 = vmatprep.subr.bf16.mxu0 0
    %1714 = vmatpush1.bf16.msra.mxu0 0
    %1715 = vmatprep.subr.bf16.mxu0 0
    %1716 = vmatpush1.bf16.msra.mxu0 0
    %1717 = vmatprep.subr.bf16.mxu0 0
    %1718 = vmatpush1.bf16.msra.mxu0 0
    %1719 = vmatprep.subr.bf16.mxu0 0
    %1720 = vmatpush1.bf16.msra.mxu0 0
    %1721 = vmatprep.subr.bf16.mxu0 0
    %1722 = vmatpush1.bf16.msra.mxu0 0
    %1723 = vmatprep.subr.bf16.mxu0 0
    %1724 = vmatpush1.bf16.msra.mxu0 0
    %1725 = vmatprep.subr.bf16.mxu0 0
    %1726 = vmatpush1.bf16.msra.mxu0 0
    %1727 = vmatprep.mubr.bf16.mxu0 0
    %1728 = vmatmul.mubr.bf16.gmra.mrb[0].mxu0 %v1534
    %v1729 = vpop.f32.mrb[0].mxu0
    %v1730 = vadd.f32 %v1682, %v1729
    %v1731 = vpop.f32.mrb[0].mxu0
    %v1732 = vpop.f32.mrb[0].mxu0
    %v1733 = vadd.f32 %v1682, %v1732
    %v1734 = vpop.f32.mrb[0].mxu0
    %1735 = vdwg.mxu0
    %v1736 = vmax.f32 %v1730, 0.0
    %v1737 = vmax.f32 %v1733, 0.0
    %v1738 = vld [vmem:[#allocation2 + $0x108] sm:$0xf]
    %v1739 = vld [vmem:[#allocation2 + $0x10c] sm:$0xf]
    %v1740 = vld [vmem:[#allocation2 + $0x110] sm:$0xf]
    %v1741 = vld [vmem:[#allocation2 + $0x114] sm:$0xf]
    %v1742 = vpack.c.bf16 %v1737, %v1736
    %v1743 = vld [vmem:[#allocation5 + $0xa8] sm:$0x1]
    %v1744 = vlaneseq
    %v1745 = vshrl.u32 %v1744, 7
    %v1746 = vsub.s32 0, %v1745
    %v1747 = vrot.slane %v1743, %v1746
    %v1752 = vunpack.c.l.b16 %v1738
    %v1753 = vunpack.c.l.b16 %v1739
    %v1754 = vunpack.c.l.b16 %v1740
    %v1755 = vunpack.c.l.b16 %v1741
    %v1756 = vpack.c.b16 %v1753, %v1752
    %v1757 = vpack.c.b16 %v1755, %v1754
    %v1761 = vsel %vm169, %v1742, 0
    %1763 = vmatprep.subr.bf16.mxu0 0
    %1764 = vmatpush1.bf16.msra.mxu0 %v1756
    %1765 = vmatprep.subr.bf16.mxu0 0
    %1766 = vmatpush1.bf16.msra.mxu0 %v1757
    %1767 = vmatprep.subr.bf16.mxu0 0
    %1768 = vmatpush1.bf16.msra.mxu0 0
    %1769 = vmatprep.subr.bf16.mxu0 0
    %1770 = vmatpush1.bf16.msra.mxu0 0
    %1771 = vmatprep.subr.bf16.mxu0 0
    %1772 = vmatpush1.bf16.msra.mxu0 0
    %1773 = vmatprep.subr.bf16.mxu0 0
    %1774 = vmatpush1.bf16.msra.mxu0 0
    %1775 = vmatprep.subr.bf16.mxu0 0
    %1776 = vmatpush1.bf16.msra.mxu0 0
    %1777 = vmatprep.subr.bf16.mxu0 0
    %1778 = vmatpush1.bf16.msra.mxu0 0
    %1779 = vmatprep.subr.bf16.mxu0 0
    %1780 = vmatpush1.bf16.msra.mxu0 0
    %1781 = vmatprep.subr.bf16.mxu0 0
    %1782 = vmatpush1.bf16.msra.mxu0 0
    %1783 = vmatprep.subr.bf16.mxu0 0
    %1784 = vmatpush1.bf16.msra.mxu0 0
    %1785 = vmatprep.subr.bf16.mxu0 0
    %1786 = vmatpush1.bf16.msra.mxu0 0
    %1787 = vmatprep.subr.bf16.mxu0 0
    %1788 = vmatpush1.bf16.msra.mxu0 0
    %1789 = vmatprep.subr.bf16.mxu0 0
    %1790 = vmatpush1.bf16.msra.mxu0 0
    %1791 = vmatprep.subr.bf16.mxu0 0
    %1792 = vmatpush1.bf16.msra.mxu0 0
    %1793 = vmatprep.subr.bf16.mxu0 0
    %1794 = vmatpush1.bf16.msra.mxu0 0
    %1795 = vmatprep.mubr.bf16.mxu0 0
    %1796 = vmatmul.mubr.bf16.gmra.mrb[0].mxu0 %v1761
    %v1797 = vpop.f32.mrb[0].mxu0
    %v1798 = vadd.f32 %v1747, %v1797
    %v1799 = vpop.f32.mrb[0].mxu0
    %v1800 = vpop.f32.mrb[0].mxu0
    %v1801 = vadd.f32 %v1747, %v1800
    %v1802 = vpop.f32.mrb[0].mxu0
    %1803 = vdwg.mxu0
    %vm1804 = vcmask 7168
    %v1805 = vsel %vm1804, %v1798, -inf
    %v1806 = vsel %vm1804, %v1801, -inf
    %v1807 = vmax.f32 %v1805, %v1806
    %v1808 = vrot.slane %v1807, 4
    %v1809 = vmax.f32 %v1807, %v1808
    %v1810 = vrot.slane %v1809, 2
    %v1811 = vmax.f32 %v1809, %v1810
    %v1812 = vrot.slane %v1811, 1
    %v1813 = vmax.f32 %v1811, %v1812
    %v1814 = vsub.f32 %v1798, %v1813
    %v1815 = vsub.f32 %v1801, %v1813
    %v1816 = vmul.f32 %v1814, 1.442695
    %v1817 = vpow.pop %v1816
    %v1818 = vmul.f32 %v1815, 1.442695
    %v1819 = vpow.pop %v1818
    %v1820 = vld [vmem:[#allocation5 + $0xf8] sm:$0xff]
    %v1821 = vld [vmem:[#allocation5 + $0x100] sm:$0xff]
    %v1823 = vsel %vm395, %v1820, 0
    %v1826 = vsel %vm395, %v1821, 0
    %1828 = vmatprep.subr.mxu0 0.0
    %1829 = vmatpush1.msra.mxu0 %v1817
    %1830 = vmatprep.subr.mxu0 0.0
    %1831 = vmatpush1.msra.mxu0 %v1819
    %1832 = vmatprep.subr.mxu0 0.0
    %1833 = vmatpush1.msra.mxu0 0.0
    %1834 = vmatprep.subr.mxu0 0.0
    %1835 = vmatpush1.msra.mxu0 0.0
    %1836 = vmatprep.subr.mxu0 0.0
    %1837 = vmatpush1.msra.mxu0 0.0
    %1838 = vmatprep.subr.mxu0 0.0
    %1839 = vmatpush1.msra.mxu0 0.0
    %1840 = vmatprep.subr.mxu0 0.0
    %1841 = vmatpush1.msra.mxu0 0.0
    %1842 = vmatprep.subr.mxu0 0.0
    %1843 = vmatpush1.msra.mxu0 0.0
    %1844 = vmatprep.subr.mxu0 0.0
    %1845 = vmatpush1.msra.mxu0 0.0
    %1846 = vmatprep.subr.mxu0 0.0
    %1847 = vmatpush1.msra.mxu0 0.0
    %1848 = vmatprep.subr.mxu0 0.0
    %1849 = vmatpush1.msra.mxu0 0.0
    %1850 = vmatprep.subr.mxu0 0.0
    %1851 = vmatpush1.msra.mxu0 0.0
    %1852 = vmatprep.subr.mxu0 0.0
    %1853 = vmatpush1.msra.mxu0 0.0
    %1854 = vmatprep.subr.mxu0 0.0
    %1855 = vmatpush1.msra.mxu0 0.0
    %1856 = vmatprep.subr.mxu0 0.0
    %1857 = vmatpush1.msra.mxu0 0.0
    %1858 = vmatprep.subr.mxu0 0.0
    %1859 = vmatpush1.msra.mxu0 0.0
    %1860 = vmatprep.subr.mxu0 0.0
    %1861 = vmatpush1.msra.mxu0 0.0
    %1862 = vmatprep.subr.mxu0 0.0
    %1863 = vmatpush1.msra.mxu0 0.0
    %1864 = vmatprep.subr.mxu0 0.0
    %1865 = vmatpush1.msra.mxu0 0.0
    %1866 = vmatprep.subr.mxu0 0.0
    %1867 = vmatpush1.msra.mxu0 0.0
    %1868 = vmatprep.subr.mxu0 0.0
    %1869 = vmatpush1.msra.mxu0 0.0
    %1870 = vmatprep.subr.mxu0 0.0
    %1871 = vmatpush1.msra.mxu0 0.0
    %1872 = vmatprep.subr.mxu0 0.0
    %1873 = vmatpush1.msra.mxu0 0.0
    %1874 = vmatprep.subr.mxu0 0.0
    %1875 = vmatpush1.msra.mxu0 0.0
    %1876 = vmatprep.subr.mxu0 0.0
    %1877 = vmatpush1.msra.mxu0 0.0
    %1878 = vmatprep.subr.mxu0 0.0
    %1879 = vmatpush1.msra.mxu0 0.0
    %1880 = vmatprep.subr.mxu0 0.0
    %1881 = vmatpush1.msra.mxu0 0.0
    %1882 = vmatprep.subr.mxu0 0.0
    %1883 = vmatpush1.msra.mxu0 0.0
    %1884 = vmatprep.subr.mxu0 0.0
    %1885 = vmatpush1.msra.mxu0 0.0
    %1886 = vmatprep.subr.mxu0 0.0
    %1887 = vmatpush1.msra.mxu0 0.0
    %1888 = vmatprep.subr.mxu0 0.0
    %1889 = vmatpush1.msra.mxu0 0.0
    %1890 = vmatprep.subr.mxu0 0.0
    %1891 = vmatpush1.msra.mxu0 0.0
    %1892 = vmatprep.mubr.f32.mxu0 0.0
    %1893 = vmatmul.mubr.f32.gmra.mrb[0].mxu0 %v1823
    %v1894 = vpop.f32.mrb[0].mxu0
    %v1895 = vadd.f32 0.0, %v1894
    %v1896 = vpop.f32.mrb[0].mxu0
    %1897 = vmatprep.mubr.f32.mxu0 0.0
    %1898 = vmatmul.mubr.f32.gmra.mrb[0].mxu0 %v1826
    %v1899 = vpop.f32.mrb[0].mxu0
    %v1900 = vadd.f32 0.0, %v1899
    %v1901 = vpop.f32.mrb[0].mxu0
    %1902 = vdwg.mxu0
    %v1903 = vlog2.pop %v1895
    %v1904 = vmul.f32 %v1903, 0.6931472
    %v1905 = vlog2.pop %v1900
    %v1906 = vmul.f32 %v1905, 0.6931472
    %v1907 = vsub.f32 %v1814, %v1904
    %v1908 = vsub.f32 %v1815, %v1906
    %1911 = vrot.lane.b32.xlu0 %v1907, 30
    %v1912 = vpop.permute.xlu0 %1911
    %1913 = vrot.lane.b32.xlu0 %v1908, 30
    %v1914 = vpop.permute.xlu0 %1913
    %vm1917 = vcmask 244736
    %v1918 = vsel %vm1917, %v1672, %v1912
    %v1919 = vsel %vm1917, %v1673, %v1914
    %vm1920 = vcmask 252928
    %1921 = vst.msk [vmem:[#allocation10] sm:$0xff] %vm1920, %v1918
    %1922 = vst.msk [vmem:[#allocation10 + $0x8] sm:$0xff] %vm1920, %v1919
    // Predicated region
    $region34: #{tpu_custom_call.1} parent=1 // pred_check
      _
    $region35: #{tpu_custom_call.1} parent=1 // pred_check_branch
      %1924 = sbr.rel (0) target = $region37
    $region36: #{tpu_custom_call.1} parent=1 // pred_region
      %s1926 = ssub.s32 256, 256
      %1927 = vsyncadd [#allocation4], %s1926
      %s1928 = sshll.u32 [#allocation10], 4
      %s1929 = int_to_ptr.vmem [resolvable:$true] %s1928
      %1934 = dma.vmem_to_hbm [thread:$0]  %s1929, 256, %s4, [#allocation4], 128, 128, 8
    $region37: #{tpu_custom_call.1} parent=1 // pred_fallthru
      _
    // Predicated region
    $region38: #{tpu_custom_call.1} parent=1 // pred_check
      _
    $region39: #{tpu_custom_call.1} parent=1 // pred_check_branch
      %1936 = sbr.rel (0) target = $region41
    $region40: #{tpu_custom_call.1} parent=1 // pred_region
      %1937 = dma.done [#allocation4], 256
    $region41: #{tpu_custom_call.1} parent=1 // pred_fallthru
      _
    %1938 = vsyncpa [#allocation3], 1
    %1939 = vsyncpa [#allocation6], 1
    %1940 = vsyncpa [#allocation9], 1
    %1941 = vsyncpa [#allocation4], 1

</llo_original>
